<compile_context>
chip_gen: v7x
topology: tpu7x:2x2x1
jax: 0.10.0
libtpu: 0.0.40
codegen_flags: <defaults>
</compile_context>

<pallas_src>
import jax
import jax.numpy as jnp
from jax import lax
from jax.experimental import pallas as pl
from jax.experimental.pallas import tpu as pltpu


# ---------------------------------------------------------------------------
# Fused SensoryEncoder kernel.
# ---------------------------------------------------------------------------
def _make_encoder_kernel(K, C_in, C_out, K_s2r, K_anti, L_tile, needs_prev):
    halo_x = K - 1                               # causal halo of k2a conv
    halo_e = (K_s2r - 1) + (K_anti - 1)          # ees halo (rate + antidromic)
    W_rate = L_tile + (K_anti - 1)               # extended rate window

    def _compute(w_ref, b_ref, rec_ref, s2r_ref, anti_ref, o_ref,
                 xf_ref, u_ref, ee_ref, ue_ref, rt_ref, ur_ref):
        # ---- kinematic2afferent: tap-major im2col -> one MXU matmul --------
        for k in range(K):
            u_ref[k * C_in:(k + 1) * C_in, :] = xf_ref[:, k:k + L_tile]
        aff = jnp.dot(w_ref[...], u_ref[...],
                      preferred_element_type=jnp.float32)
        aff = jnp.maximum(aff + b_ref[...], 0.0)                 # (C_out, Lt)

        # ---- spike2rate FIR over the extended window ------------------------
        for k in range(K_s2r):
            ue_ref[k:k + 1, :] = ee_ref[:, k:k + W_rate]
        rate = jnp.dot(s2r_ref[:, :K_s2r], ue_ref[...],
                       preferred_element_type=jnp.float32)
        rate = jnp.maximum(rate + s2r_ref[:, K_s2r:], 0.0)       # (1, W_rate)
        rt_ref[...] = rate

        # Antidromic conv zero-pads ees_ortho on the left: the leading
        # K_anti-1 extended-rate samples correspond to negative absolute time
        # on the first tile and must contribute zero (not relu(bias)).
        if K_anti > 1:
            @pl.when(pl.program_id(1) == 0)
            def _():
                rt_ref[:, :K_anti - 1] = jnp.zeros((1, K_anti - 1),
                                                   rt_ref.dtype)

        # ---- antidromic FIR of rate (channel-independent part z) -----------
        # ees_ortho[c,t] = rec[c]*rate[t]  =>  conv(ees_ortho)[c,t] = rec[c]*z[t]
        for k in range(K_anti):
            ur_ref[k:k + 1, :] = rt_ref[:, k:k + L_tile]
        z = jnp.dot(anti_ref[:, :K_anti], ur_ref[...],
                    preferred_element_type=jnp.float32)          # (1, Lt)

        # ---- combine --------------------------------------------------------
        rec = rec_ref[0]                                         # (C_out, 1)
        ortho = rec * rt_ref[:, K_anti - 1:]                     # (C_out, Lt)
        anti_act = jnp.maximum(rec * z + anti_ref[:, K_anti:], 0.0)
        out = ortho + jnp.maximum(aff - anti_act, 0.0)
        o_ref[0] = out.astype(o_ref.dtype)

    if needs_prev:
        def kernel(w_ref, b_ref, rec_ref, s2r_ref, anti_ref,
                   x_prev_ref, x_cur_ref, e_prev_ref, e_cur_ref,
                   o_ref, xf_ref, u_ref, ee_ref, ue_ref, rt_ref, ur_ref):
            l = pl.program_id(1)

            @pl.when(l == 0)
            def _():  # causal zero padding on the very first time tile
                if halo_x > 0:
                    xf_ref[:, :halo_x] = jnp.zeros((C_in, halo_x),
                                                   xf_ref.dtype)
                if halo_e > 0:
                    ee_ref[:, :halo_e] = jnp.zeros((1, halo_e), ee_ref.dtype)

            @pl.when(l > 0)
            def _():  # halo = tail of the previous time tile
                if halo_x > 0:
                    xf_ref[:, :halo_x] = x_prev_ref[0, :, L_tile - halo_x:]
                if halo_e > 0:
                    ee_ref[:, :halo_e] = jnp.minimum(
                        e_prev_ref[0, :, L_tile - halo_e:], 1.0)

            xf_ref[:, halo_x:] = x_cur_ref[0]
            ee_ref[:, halo_e:] = jnp.minimum(e_cur_ref[0], 1.0)  # clamp_(max=1)
            _compute(w_ref, b_ref, rec_ref, s2r_ref, anti_ref, o_ref,
                     xf_ref, u_ref, ee_ref, ue_ref, rt_ref, ur_ref)

        return kernel

    def kernel(w_ref, b_ref, rec_ref, s2r_ref, anti_ref, x_ref, e_ref,
               o_ref, xf_ref, u_ref, ee_ref, ue_ref, rt_ref, ur_ref):
        if halo_x > 0:
            xf_ref[:, :halo_x] = jnp.zeros((C_in, halo_x), xf_ref.dtype)
        if halo_e > 0:
            ee_ref[:, :halo_e] = jnp.zeros((1, halo_e), ee_ref.dtype)
        xf_ref[:, halo_x:] = x_ref[0]
        ee_ref[:, halo_e:] = jnp.minimum(e_ref[0], 1.0)          # clamp_(max=1)
        _compute(w_ref, b_ref, rec_ref, s2r_ref, anti_ref, o_ref,
                 xf_ref, u_ref, ee_ref, ue_ref, rt_ref, ur_ref)

    return kernel


# ---------------------------------------------------------------------------
# SensoryEncoder forward (use_norm=None, activation='relu', groups=1).
# ---------------------------------------------------------------------------
def sensory_encoder_forward(params, x, ees, *, l_tile=512):
    """x: (N, C_in, L); ees: (N, 1, L).  Returns (N, C_out, L)."""
    N, C_in, L = x.shape
    C_out, C_in_w, K = params["k2a_w"].shape
    assert C_in_w == C_in, "groups != 1 not supported"  # TODO(synk): grouped conv
    K_s2r = params["s2r_w"].shape[2]
    K_anti = params["anti_w"].shape[2]
    halo_x = K - 1
    halo_e = (K_s2r - 1) + (K_anti - 1)

    # Lane-dense time tiling; fall back to one full-length tile when L does
    # not tile cleanly or the tile cannot hold the causal halos.
    if (L > l_tile and L % l_tile == 0 and l_tile % 128 == 0
            and l_tile >= max(halo_x, halo_e)):
        L_tile = l_tile
    else:
        L_tile = L
    num_l = L // L_tile
    needs_prev = num_l > 1
    W_rate = L_tile + (K_anti - 1)

    # Recruitment: global max over time (pre-clamp!) + per-channel affine +
    # sigmoid.  Tiny (N, C_out) tensor, computed in plain JAX before tiling.
    ees_amp = jnp.max(ees, axis=2)                        # (N, 1)
    ees_amp = jnp.tile(ees_amp, (1, C_out))               # (N, C_out)
    rec = jax.nn.sigmoid(ees_amp * params["affine_gamma"]
                         + params["affine_beta"])
    rec3 = rec.reshape(N, C_out, 1).astype(jnp.float32)

    # Tap-major flattened k2a weight: w2[o, k*C_in + c] = weight[o, c, k].
    w2 = jnp.transpose(params["k2a_w"], (0, 2, 1)).reshape(C_out, K * C_in)
    b2 = params["k2a_b"].reshape(C_out, 1)
    # FIR taps + bias packed into single lane-major rows (resident in VMEM).
    s2r = jnp.concatenate([params["s2r_w"].reshape(1, K_s2r),
                           params["s2r_b"].reshape(1, 1)], axis=1)
    anti = jnp.concatenate([params["anti_w"].reshape(1, K_anti),
                            params["anti_b"].reshape(1, 1)], axis=1)

    kernel = _make_encoder_kernel(K, C_in, C_out, K_s2r, K_anti, L_tile,
                                  needs_prev)

    in_specs = [
        pl.BlockSpec((C_out, K * C_in), lambda n, l: (0, 0)),   # k2a weight
        pl.BlockSpec((C_out, 1), lambda n, l: (0, 0)),          # k2a bias
        pl.BlockSpec((1, C_out, 1), lambda n, l: (n, 0, 0)),    # recruitment
        pl.BlockSpec((1, K_s2r + 1), lambda n, l: (0, 0)),      # s2r taps+bias
        pl.BlockSpec((1, K_anti + 1), lambda n, l: (0, 0)),     # anti taps+bias
    ]
    operands = [w2, b2, rec3, s2r, anti]
    if needs_prev:
        in_specs += [
            pl.BlockSpec((1, C_in, L_tile),
                         lambda n, l: (n, 0, jnp.maximum(l - 1, 0))),
            pl.BlockSpec((1, C_in, L_tile), lambda n, l: (n, 0, l)),
            pl.BlockSpec((1, 1, L_tile),
                         lambda n, l: (n, 0, jnp.maximum(l - 1, 0))),
            pl.BlockSpec((1, 1, L_tile), lambda n, l: (n, 0, l)),
        ]
        operands += [x, x, ees, ees]
    else:
        in_specs += [
            pl.BlockSpec((1, C_in, L_tile), lambda n, l: (n, 0, l)),
            pl.BlockSpec((1, 1, L_tile), lambda n, l: (n, 0, l)),
        ]
        operands += [x, ees]

    return pl.pallas_call(
        kernel,
        out_shape=jax.ShapeDtypeStruct((N, C_out, L), x.dtype),
        grid_spec=pltpu.PrefetchScalarGridSpec(
            num_scalar_prefetch=0,
            grid=(N, num_l),
            in_specs=in_specs,
            out_specs=pl.BlockSpec((1, C_out, L_tile), lambda n, l: (n, 0, l)),
            scratch_shapes=[
                pltpu.VMEM((C_in, L_tile + halo_x), x.dtype),    # x halo+cur
                pltpu.VMEM((K * C_in, L_tile), x.dtype),         # k2a im2col
                pltpu.VMEM((1, L_tile + halo_e), jnp.float32),   # clamped ees
                pltpu.VMEM((K_s2r, W_rate), jnp.float32),        # s2r im2col
                pltpu.VMEM((1, W_rate), jnp.float32),            # extended rate
                pltpu.VMEM((K_anti, L_tile), jnp.float32),       # anti im2col
            ],
        ),
        compiler_params=pltpu.CompilerParams(
            dimension_semantics=("parallel", "parallel")),
    )(*operands)


# ---------------------------------------------------------------------------
# Pure-JAX references.
# ---------------------------------------------------------------------------
def causal_conv1d_ref(x, weight, bias):
    K = weight.shape[2]
    pad = K - 1
    y = lax.conv_general_dilated(
        x, weight, window_strides=(1,), padding=[(pad, pad)],
        dimension_numbers=("NCH", "OIH", "NCH"),
        precision=lax.Precision.HIGHEST)
    y = y + bias[None, :, None]
    if pad > 0:
        y = y[:, :, :-pad]
    return y


def sensory_encoder_ref(params, x, ees):
    N, _, L = x.shape
    C_out = params["k2a_w"].shape[0]
    ees_amp = jnp.max(ees, axis=2)
    ees_spike = jnp.minimum(ees, 1.0)
    afferents = jax.nn.relu(
        causal_conv1d_ref(x, params["k2a_w"], params["k2a_b"]))
    ees_amp = jnp.tile(ees_amp, (1, C_out))
    rec = jax.nn.sigmoid(ees_amp * params["affine_gamma"]
                         + params["affine_beta"])[:, :, None]
    ees_rate = jax.nn.relu(
        causal_conv1d_ref(ees_spike, params["s2r_w"], params["s2r_b"]))
    ees_ortho = rec * ees_rate
    ees_anti = jax.nn.relu(
        causal_conv1d_ref(ees_ortho.reshape(N * C_out, 1, L),
                          params["anti_w"], params["anti_b"]))
    ees_anti = ees_anti.reshape(N, C_out, L)
    return ees_ortho + jax.nn.relu(afferents - ees_anti)


def init_sensory_encoder_params(key, in_channels, out_channels, kernel_size):
    ks = jax.random.split(key, 6)

    def conv_init(kw, kb, c_out, c_in, k):
        bound = 1.0 / jnp.sqrt(c_in * k)
        w = jax.random.uniform(kw, (c_out, c_in, k), jnp.float32, -bound, bound)
        b = jax.random.uniform(kb, (c_out,), jnp.float32, -bound, bound)
        return w, b

    k2a_w, k2a_b = conv_init(ks[0], ks[1], out_channels, in_channels, kernel_size)
    s2r_w, s2r_b = conv_init(ks[2], ks[3], 1, 1, 30)
    anti_w, anti_b = conv_init(ks[4], ks[5], 1, 1, 20)
    return dict(
        k2a_w=k2a_w, k2a_b=k2a_b,
        s2r_w=s2r_w, s2r_b=s2r_b,
        anti_w=anti_w, anti_b=anti_b,
        affine_gamma=jnp.full((out_channels,), 0.1, jnp.float32),
        affine_beta=jnp.full((out_channels,), -26.0, jnp.float32),
    )


if __name__ == "__main__":
    key = jax.random.PRNGKey(0)
    keys = jax.random.split(key, 6)

    # --- (a) module-default small shapes, single time tile ------------------
    N, C_in, C_out, K, L = 2, 4, 8, 3, 16
    params = init_sensory_encoder_params(keys[0], C_in, C_out, K)
    x = jax.random.normal(keys[1], (N, C_in, L), jnp.float32)
    ees = jax.random.uniform(keys[2], (N, 1, L), jnp.float32, 0.0, 3.0)
    out = jax.block_until_ready(sensory_encoder_forward(params, x, ees))
    out_ref = sensory_encoder_ref(params, x, ees)
    assert out.shape == (N, C_out, L), out.shape
    assert jnp.allclose(out, out_ref, atol=1e-4, rtol=1e-4), "encoder (L=16) mismatch"

    # --- (b) multi-tile time axis with a numerically visible EES path -------
    # (default beta=-26 makes recruitment ~1e-11; also force a positive
    #  spike2rate bias so the antidromic left-padding semantics are exercised)
    params_vis = dict(params,
                      affine_gamma=jnp.ones((C_out,), jnp.float32),
                      affine_beta=jnp.zeros((C_out,), jnp.float32),
                      s2r_b=jnp.array([0.1], jnp.float32))
    L2 = 256
    x2 = jax.random.normal(keys[3], (N, C_in, L2), jnp.float32)
    ees2 = jax.random.uniform(keys[4], (N, 1, L2), jnp.float32, 0.0, 3.0)
    out2 = jax.block_until_ready(
        sensory_encoder_forward(params_vis, x2, ees2, l_tile=128))
    out2_ref = sensory_encoder_ref(params_vis, x2, ees2)
    assert jnp.allclose(out2, out2_ref, atol=1e-4, rtol=1e-4), "encoder (tiled) mismatch"

    # --- (c) default l_tile=512 on a longer sequence (2 time tiles) ---------
    L3 = 1024
    x3 = jax.random.normal(keys[5], (N, C_in, L3), jnp.float32)
    ees3 = jax.random.uniform(keys[2], (N, 1, L3), jnp.float32, 0.0, 3.0)
    out3 = jax.block_until_ready(sensory_encoder_forward(params_vis, x3, ees3))
    out3_ref = sensory_encoder_ref(params_vis, x3, ees3)
    assert jnp.allclose(out3, out3_ref, atol=1e-4, rtol=1e-4), "encoder (L=1024) mismatch"

    print("KERNEL_OK")
</pallas_src>

<mosaic_0001>
module attributes {stable_mosaic.version = 11 : i64} {
  func.func @kernel(%arg0: i32, %arg1: i32, %arg2: memref<8x12xf32, #tpu.memory_space<vmem>>, %arg3: memref<8x1xf32, #tpu.memory_space<vmem>>, %arg4: memref<1x8x1xf32, #tpu.memory_space<vmem>>, %arg5: memref<1x31xf32, #tpu.memory_space<vmem>>, %arg6: memref<1x21xf32, #tpu.memory_space<vmem>>, %arg7: memref<1x4x16xf32, #tpu.memory_space<vmem>>, %arg8: memref<1x1x16xf32, #tpu.memory_space<vmem>>, %arg9: memref<1x8x16xf32, #tpu.memory_space<vmem>>, %arg10: memref<4x18xf32, #tpu.memory_space<vmem>>, %arg11: memref<12x16xf32, #tpu.memory_space<vmem>>, %arg12: memref<1x64xf32, #tpu.memory_space<vmem>>, %arg13: memref<30x35xf32, #tpu.memory_space<vmem>>, %arg14: memref<1x35xf32, #tpu.memory_space<vmem>>, %arg15: memref<20x16xf32, #tpu.memory_space<vmem>>) attributes {dimension_semantics = [#tpu.dimension_semantics<parallel>, #tpu.dimension_semantics<parallel>], iteration_bounds = array<i64: 2, 1>, scalar_prefetch = 0 : i64, scratch_operands = 6 : i64, tpu.core_type = #tpu.core_type<tc>, window_params = [{pipeline_mode = #tpu.pipeline_mode<synchronous>, transform_indices = @transform_0, window_bounds = array<i64: 8, 12>}, {pipeline_mode = #tpu.pipeline_mode<synchronous>, transform_indices = @transform_1, window_bounds = array<i64: 8, 1>}, {transform_indices = @transform_2, window_bounds = array<i64: 1, 8, 1>}, {pipeline_mode = #tpu.pipeline_mode<synchronous>, transform_indices = @transform_3, window_bounds = array<i64: 1, 31>}, {pipeline_mode = #tpu.pipeline_mode<synchronous>, transform_indices = @transform_4, window_bounds = array<i64: 1, 21>}, {transform_indices = @transform_5, window_bounds = array<i64: 1, 4, 16>}, {transform_indices = @transform_6, window_bounds = array<i64: 1, 1, 16>}, {transform_indices = @transform_7, window_bounds = array<i64: 1, 8, 16>}]} {
    %cst = arith.constant 0.000000e+00 : f32
    %0 = vector.broadcast %cst : f32 to vector<4x2xf32>
    %c0 = arith.constant 0 : index
    %c0_0 = arith.constant 0 : index
    %1 = vector.load %arg10[%c0, %c0_0] : memref<4x18xf32, #tpu.memory_space<vmem>>, vector<4x2xf32>
    tpu.vector_store %arg10[%c0, %c0_0], %0 {strides = array<i32>} : memref<4x18xf32, #tpu.memory_space<vmem>>, vector<4x2xf32>,
    %cst_1 = arith.constant 0.000000e+00 : f32
    %2 = vector.broadcast %cst_1 : f32 to vector<1x48xf32>
    %c0_2 = arith.constant 0 : index
    %c0_3 = arith.constant 0 : index
    %3 = vector.load %arg12[%c0_2, %c0_3] : memref<1x64xf32, #tpu.memory_space<vmem>>, vector<1x48xf32>
    tpu.vector_store %arg12[%c0_2, %c0_3], %2 {strides = array<i32>} : memref<1x64xf32, #tpu.memory_space<vmem>>, vector<1x48xf32>,
    %c0_4 = arith.constant 0 : index
    %c0_5 = arith.constant 0 : index
    %c0_6 = arith.constant 0 : index
    %4 = vector.load %arg7[%c0_4, %c0_5, %c0_6] : memref<1x4x16xf32, #tpu.memory_space<vmem>>, vector<1x4x16xf32>
    %5 = vector.shape_cast %4 : vector<1x4x16xf32> to vector<4x16xf32>
    %c0_7 = arith.constant 0 : index
    %c2 = arith.constant 2 : index
    %6 = vector.load %arg10[%c0_7, %c2] : memref<4x18xf32, #tpu.memory_space<vmem>>, vector<4x16xf32>
    tpu.vector_store %arg10[%c0_7, %c2], %5 {strides = array<i32>} : memref<4x18xf32, #tpu.memory_space<vmem>>, vector<4x16xf32>,
    %c0_8 = arith.constant 0 : index
    %c0_9 = arith.constant 0 : index
    %c0_10 = arith.constant 0 : index
    %7 = vector.load %arg8[%c0_8, %c0_9, %c0_10] : memref<1x1x16xf32, #tpu.memory_space<vmem>>, vector<1x1x16xf32>
    %8 = vector.shape_cast %7 : vector<1x1x16xf32> to vector<1x16xf32>
    %cst_11 = arith.constant 1.000000e+00 : f32
    %9 = vector.broadcast %cst_11 : f32 to vector<1x16xf32>
    %10 = arith.minimumf %8, %9 : vector<1x16xf32>
    %c0_12 = arith.constant 0 : index
    %c48 = arith.constant 48 : index
    %11 = vector.load %arg12[%c0_12, %c48] : memref<1x64xf32, #tpu.memory_space<vmem>>, vector<1x16xf32>
    tpu.vector_store %arg12[%c0_12, %c48], %10 {strides = array<i32>} : memref<1x64xf32, #tpu.memory_space<vmem>>, vector<1x16xf32>,
    %c0_13 = arith.constant 0 : index
    %c0_14 = arith.constant 0 : index
    %12 = vector.load %arg10[%c0_13, %c0_14] : memref<4x18xf32, #tpu.memory_space<vmem>>, vector<4x16xf32>
    %c0_15 = arith.constant 0 : index
    %c0_16 = arith.constant 0 : index
    %13 = vector.load %arg11[%c0_15, %c0_16] : memref<12x16xf32, #tpu.memory_space<vmem>>, vector<4x16xf32>
    tpu.vector_store %arg11[%c0_15, %c0_16], %12 {strides = array<i32>} : memref<12x16xf32, #tpu.memory_space<vmem>>, vector<4x16xf32>,
    %c0_17 = arith.constant 0 : index
    %c1 = arith.constant 1 : index
    %14 = vector.load %arg10[%c0_17, %c1] : memref<4x18xf32, #tpu.memory_space<vmem>>, vector<4x16xf32>
    %c4 = arith.constant 4 : index
    %c0_18 = arith.constant 0 : index
    %15 = vector.load %arg11[%c4, %c0_18] : memref<12x16xf32, #tpu.memory_space<vmem>>, vector<4x16xf32>
    tpu.vector_store %arg11[%c4, %c0_18], %14 {strides = array<i32>} : memref<12x16xf32, #tpu.memory_space<vmem>>, vector<4x16xf32>,
    %c0_19 = arith.constant 0 : index
    %c2_20 = arith.constant 2 : index
    %16 = vector.load %arg10[%c0_19, %c2_20] : memref<4x18xf32, #tpu.memory_space<vmem>>, vector<4x16xf32>
    %c8 = arith.constant 8 : index
    %c0_21 = arith.constant 0 : index
    %17 = vector.load %arg11[%c8, %c0_21] : memref<12x16xf32, #tpu.memory_space<vmem>>, vector<4x16xf32>
    tpu.vector_store %arg11[%c8, %c0_21], %16 {strides = array<i32>} : memref<12x16xf32, #tpu.memory_space<vmem>>, vector<4x16xf32>,
    %c0_22 = arith.constant 0 : index
    %c0_23 = arith.constant 0 : index
    %18 = vector.load %arg2[%c0_22, %c0_23] : memref<8x12xf32, #tpu.memory_space<vmem>>, vector<8x12xf32>
    %c0_24 = arith.constant 0 : index
    %c0_25 = arith.constant 0 : index
    %19 = vector.load %arg11[%c0_24, %c0_25] : memref<12x16xf32, #tpu.memory_space<vmem>>, vector<12x16xf32>
    %cst_26 = arith.constant dense<0.000000e+00> : vector<8x16xf32>
    %20 = tpu.matmul %18, %19, %cst_26 {dimension_numbers = #tpu.dot_dimension_numbers<[1], [0], [0], [1], [0, 0, 1, 1], [], []>} : vector<8x12xf32>, vector<12x16xf32>, vector<8x16xf32> -> vector<8x16xf32>
    %c0_27 = arith.constant 0 : index
    %c0_28 = arith.constant 0 : index
    %21 = vector.load %arg3[%c0_27, %c0_28] : memref<8x1xf32, #tpu.memory_space<vmem>>, vector<8x1xf32>
    %22 = vector.broadcast %21 : vector<8x1xf32> to vector<8x16xf32>
    %23 = arith.addf %20, %22 : vector<8x16xf32>
    %cst_29 = arith.constant 0.000000e+00 : f32
    %24 = vector.broadcast %cst_29 : f32 to vector<8x16xf32>
    %25 = arith.maximumf %23, %24 : vector<8x16xf32>
    %c0_30 = arith.constant 0 : index
    %c0_31 = arith.constant 0 : index
    %26 = vector.load %arg12[%c0_30, %c0_31] : memref<1x64xf32, #tpu.memory_space<vmem>>, vector<1x35xf32>
    %c0_32 = arith.constant 0 : index
    %c0_33 = arith.constant 0 : index
    %27 = vector.load %arg13[%c0_32, %c0_33] : memref<30x35xf32, #tpu.memory_space<vmem>>, vector<1x35xf32>
    tpu.vector_store %arg13[%c0_32, %c0_33], %26 {strides = array<i32>} : memref<30x35xf32, #tpu.memory_space<vmem>>, vector<1x35xf32>,
    %c0_34 = arith.constant 0 : index
    %c1_35 = arith.constant 1 : index
    %28 = vector.load %arg12[%c0_34, %c1_35] : memref<1x64xf32, #tpu.memory_space<vmem>>, vector<1x35xf32>
    %c1_36 = arith.constant 1 : index
    %c0_37 = arith.constant 0 : index
    %29 = vector.load %arg13[%c1_36, %c0_37] : memref<30x35xf32, #tpu.memory_space<vmem>>, vector<1x35xf32>
    tpu.vector_store %arg13[%c1_36, %c0_37], %28 {strides = array<i32>} : memref<30x35xf32, #tpu.memory_space<vmem>>, vector<1x35xf32>,
    %c0_38 = arith.constant 0 : index
    %c2_39 = arith.constant 2 : index
    %30 = vector.load %arg12[%c0_38, %c2_39] : memref<1x64xf32, #tpu.memory_space<vmem>>, vector<1x35xf32>
    %c2_40 = arith.constant 2 : index
    %c0_41 = arith.constant 0 : index
    %31 = vector.load %arg13[%c2_40, %c0_41] : memref<30x35xf32, #tpu.memory_space<vmem>>, vector<1x35xf32>
    tpu.vector_store %arg13[%c2_40, %c0_41], %30 {strides = array<i32>} : memref<30x35xf32, #tpu.memory_space<vmem>>, vector<1x35xf32>,
    %c0_42 = arith.constant 0 : index
    %c3 = arith.constant 3 : index
    %32 = vector.load %arg12[%c0_42, %c3] : memref<1x64xf32, #tpu.memory_space<vmem>>, vector<1x35xf32>
    %c3_43 = arith.constant 3 : index
    %c0_44 = arith.constant 0 : index
    %33 = vector.load %arg13[%c3_43, %c0_44] : memref<30x35xf32, #tpu.memory_space<vmem>>, vector<1x35xf32>
    tpu.vector_store %arg13[%c3_43, %c0_44], %32 {strides = array<i32>} : memref<30x35xf32, #tpu.memory_space<vmem>>, vector<1x35xf32>,
    %c0_45 = arith.constant 0 : index
    %c4_46 = arith.constant 4 : index
    %34 = vector.load %arg12[%c0_45, %c4_46] : memref<1x64xf32, #tpu.memory_space<vmem>>, vector<1x35xf32>
    %c4_47 = arith.constant 4 : index
    %c0_48 = arith.constant 0 : index
    %35 = vector.load %arg13[%c4_47, %c0_48] : memref<30x35xf32, #tpu.memory_space<vmem>>, vector<1x35xf32>
    tpu.vector_store %arg13[%c4_47, %c0_48], %34 {strides = array<i32>} : memref<30x35xf32, #tpu.memory_space<vmem>>, vector<1x35xf32>,
    %c0_49 = arith.constant 0 : index
    %c5 = arith.constant 5 : index
    %36 = vector.load %arg12[%c0_49, %c5] : memref<1x64xf32, #tpu.memory_space<vmem>>, vector<1x35xf32>
    %c5_50 = arith.constant 5 : index
    %c0_51 = arith.constant 0 : index
    %37 = vector.load %arg13[%c5_50, %c0_51] : memref<30x35xf32, #tpu.memory_space<vmem>>, vector<1x35xf32>
    tpu.vector_store %arg13[%c5_50, %c0_51], %36 {strides = array<i32>} : memref<30x35xf32, #tpu.memory_space<vmem>>, vector<1x35xf32>,
    %c0_52 = arith.constant 0 : index
    %c6 = arith.constant 6 : index
    %38 = vector.load %arg12[%c0_52, %c6] : memref<1x64xf32, #tpu.memory_space<vmem>>, vector<1x35xf32>
    %c6_53 = arith.constant 6 : index
    %c0_54 = arith.constant 0 : index
    %39 = vector.load %arg13[%c6_53, %c0_54] : memref<30x35xf32, #tpu.memory_space<vmem>>, vector<1x35xf32>
    tpu.vector_store %arg13[%c6_53, %c0_54], %38 {strides = array<i32>} : memref<30x35xf32, #tpu.memory_space<vmem>>, vector<1x35xf32>,
    %c0_55 = arith.constant 0 : index
    %c7 = arith.constant 7 : index
    %40 = vector.load %arg12[%c0_55, %c7] : memref<1x64xf32, #tpu.memory_space<vmem>>, vector<1x35xf32>
    %c7_56 = arith.constant 7 : index
    %c0_57 = arith.constant 0 : index
    %41 = vector.load %arg13[%c7_56, %c0_57] : memref<30x35xf32, #tpu.memory_space<vmem>>, vector<1x35xf32>
    tpu.vector_store %arg13[%c7_56, %c0_57], %40 {strides = array<i32>} : memref<30x35xf32, #tpu.memory_space<vmem>>, vector<1x35xf32>,
    %c0_58 = arith.constant 0 : index
    %c8_59 = arith.constant 8 : index
    %42 = vector.load %arg12[%c0_58, %c8_59] : memref<1x64xf32, #tpu.memory_space<vmem>>, vector<1x35xf32>
    %c8_60 = arith.constant 8 : index
    %c0_61 = arith.constant 0 : index
    %43 = vector.load %arg13[%c8_60, %c0_61] : memref<30x35xf32, #tpu.memory_space<vmem>>, vector<1x35xf32>
    tpu.vector_store %arg13[%c8_60, %c0_61], %42 {strides = array<i32>} : memref<30x35xf32, #tpu.memory_space<vmem>>, vector<1x35xf32>,
    %c0_62 = arith.constant 0 : index
    %c9 = arith.constant 9 : index
    %44 = vector.load %arg12[%c0_62, %c9] : memref<1x64xf32, #tpu.memory_space<vmem>>, vector<1x35xf32>
    %c9_63 = arith.constant 9 : index
    %c0_64 = arith.constant 0 : index
    %45 = vector.load %arg13[%c9_63, %c0_64] : memref<30x35xf32, #tpu.memory_space<vmem>>, vector<1x35xf32>
    tpu.vector_store %arg13[%c9_63, %c0_64], %44 {strides = array<i32>} : memref<30x35xf32, #tpu.memory_space<vmem>>, vector<1x35xf32>,
    %c0_65 = arith.constant 0 : index
    %c10 = arith.constant 10 : index
    %46 = vector.load %arg12[%c0_65, %c10] : memref<1x64xf32, #tpu.memory_space<vmem>>, vector<1x35xf32>
    %c10_66 = arith.constant 10 : index
    %c0_67 = arith.constant 0 : index
    %47 = vector.load %arg13[%c10_66, %c0_67] : memref<30x35xf32, #tpu.memory_space<vmem>>, vector<1x35xf32>
    tpu.vector_store %arg13[%c10_66, %c0_67], %46 {strides = array<i32>} : memref<30x35xf32, #tpu.memory_space<vmem>>, vector<1x35xf32>,
    %c0_68 = arith.constant 0 : index
    %c11 = arith.constant 11 : index
    %48 = vector.load %arg12[%c0_68, %c11] : memref<1x64xf32, #tpu.memory_space<vmem>>, vector<1x35xf32>
    %c11_69 = arith.constant 11 : index
    %c0_70 = arith.constant 0 : index
    %49 = vector.load %arg13[%c11_69, %c0_70] : memref<30x35xf32, #tpu.memory_space<vmem>>, vector<1x35xf32>
    tpu.vector_store %arg13[%c11_69, %c0_70], %48 {strides = array<i32>} : memref<30x35xf32, #tpu.memory_space<vmem>>, vector<1x35xf32>,
    %c0_71 = arith.constant 0 : index
    %c12 = arith.constant 12 : index
    %50 = vector.load %arg12[%c0_71, %c12] : memref<1x64xf32, #tpu.memory_space<vmem>>, vector<1x35xf32>
    %c12_72 = arith.constant 12 : index
    %c0_73 = arith.constant 0 : index
    %51 = vector.load %arg13[%c12_72, %c0_73] : memref<30x35xf32, #tpu.memory_space<vmem>>, vector<1x35xf32>
    tpu.vector_store %arg13[%c12_72, %c0_73], %50 {strides = array<i32>} : memref<30x35xf32, #tpu.memory_space<vmem>>, vector<1x35xf32>,
    %c0_74 = arith.constant 0 : index
    %c13 = arith.constant 13 : index
    %52 = vector.load %arg12[%c0_74, %c13] : memref<1x64xf32, #tpu.memory_space<vmem>>, vector<1x35xf32>
    %c13_75 = arith.constant 13 : index
    %c0_76 = arith.constant 0 : index
    %53 = vector.load %arg13[%c13_75, %c0_76] : memref<30x35xf32, #tpu.memory_space<vmem>>, vector<1x35xf32>
    tpu.vector_store %arg13[%c13_75, %c0_76], %52 {strides = array<i32>} : memref<30x35xf32, #tpu.memory_space<vmem>>, vector<1x35xf32>,
    %c0_77 = arith.constant 0 : index
    %c14 = arith.constant 14 : index
    %54 = vector.load %arg12[%c0_77, %c14] : memref<1x64xf32, #tpu.memory_space<vmem>>, vector<1x35xf32>
    %c14_78 = arith.constant 14 : index
    %c0_79 = arith.constant 0 : index
    %55 = vector.load %arg13[%c14_78, %c0_79] : memref<30x35xf32, #tpu.memory_space<vmem>>, vector<1x35xf32>
    tpu.vector_store %arg13[%c14_78, %c0_79], %54 {strides = array<i32>} : memref<30x35xf32, #tpu.memory_space<vmem>>, vector<1x35xf32>,
    %c0_80 = arith.constant 0 : index
    %c15 = arith.constant 15 : index
    %56 = vector.load %arg12[%c0_80, %c15] : memref<1x64xf32, #tpu.memory_space<vmem>>, vector<1x35xf32>
    %c15_81 = arith.constant 15 : index
    %c0_82 = arith.constant 0 : index
    %57 = vector.load %arg13[%c15_81, %c0_82] : memref<30x35xf32, #tpu.memory_space<vmem>>, vector<1x35xf32>
    tpu.vector_store %arg13[%c15_81, %c0_82], %56 {strides = array<i32>} : memref<30x35xf32, #tpu.memory_space<vmem>>, vector<1x35xf32>,
    %c0_83 = arith.constant 0 : index
    %c16 = arith.constant 16 : index
    %58 = vector.load %arg12[%c0_83, %c16] : memref<1x64xf32, #tpu.memory_space<vmem>>, vector<1x35xf32>
    %c16_84 = arith.constant 16 : index
    %c0_85 = arith.constant 0 : index
    %59 = vector.load %arg13[%c16_84, %c0_85] : memref<30x35xf32, #tpu.memory_space<vmem>>, vector<1x35xf32>
    tpu.vector_store %arg13[%c16_84, %c0_85], %58 {strides = array<i32>} : memref<30x35xf32, #tpu.memory_space<vmem>>, vector<1x35xf32>,
    %c0_86 = arith.constant 0 : index
    %c17 = arith.constant 17 : index
    %60 = vector.load %arg12[%c0_86, %c17] : memref<1x64xf32, #tpu.memory_space<vmem>>, vector<1x35xf32>
    %c17_87 = arith.constant 17 : index
    %c0_88 = arith.constant 0 : index
    %61 = vector.load %arg13[%c17_87, %c0_88] : memref<30x35xf32, #tpu.memory_space<vmem>>, vector<1x35xf32>
    tpu.vector_store %arg13[%c17_87, %c0_88], %60 {strides = array<i32>} : memref<30x35xf32, #tpu.memory_space<vmem>>, vector<1x35xf32>,
    %c0_89 = arith.constant 0 : index
    %c18 = arith.constant 18 : index
    %62 = vector.load %arg12[%c0_89, %c18] : memref<1x64xf32, #tpu.memory_space<vmem>>, vector<1x35xf32>
    %c18_90 = arith.constant 18 : index
    %c0_91 = arith.constant 0 : index
    %63 = vector.load %arg13[%c18_90, %c0_91] : memref<30x35xf32, #tpu.memory_space<vmem>>, vector<1x35xf32>
    tpu.vector_store %arg13[%c18_90, %c0_91], %62 {strides = array<i32>} : memref<30x35xf32, #tpu.memory_space<vmem>>, vector<1x35xf32>,
    %c0_92 = arith.constant 0 : index
    %c19 = arith.constant 19 : index
    %64 = vector.load %arg12[%c0_92, %c19] : memref<1x64xf32, #tpu.memory_space<vmem>>, vector<1x35xf32>
    %c19_93 = arith.constant 19 : index
    %c0_94 = arith.constant 0 : index
    %65 = vector.load %arg13[%c19_93, %c0_94] : memref<30x35xf32, #tpu.memory_space<vmem>>, vector<1x35xf32>
    tpu.vector_store %arg13[%c19_93, %c0_94], %64 {strides = array<i32>} : memref<30x35xf32, #tpu.memory_space<vmem>>, vector<1x35xf32>,
    %c0_95 = arith.constant 0 : index
    %c20 = arith.constant 20 : index
    %66 = vector.load %arg12[%c0_95, %c20] : memref<1x64xf32, #tpu.memory_space<vmem>>, vector<1x35xf32>
    %c20_96 = arith.constant 20 : index
    %c0_97 = arith.constant 0 : index
    %67 = vector.load %arg13[%c20_96, %c0_97] : memref<30x35xf32, #tpu.memory_space<vmem>>, vector<1x35xf32>
    tpu.vector_store %arg13[%c20_96, %c0_97], %66 {strides = array<i32>} : memref<30x35xf32, #tpu.memory_space<vmem>>, vector<1x35xf32>,
    %c0_98 = arith.constant 0 : index
    %c21 = arith.constant 21 : index
    %68 = vector.load %arg12[%c0_98, %c21] : memref<1x64xf32, #tpu.memory_space<vmem>>, vector<1x35xf32>
    %c21_99 = arith.constant 21 : index
    %c0_100 = arith.constant 0 : index
    %69 = vector.load %arg13[%c21_99, %c0_100] : memref<30x35xf32, #tpu.memory_space<vmem>>, vector<1x35xf32>
    tpu.vector_store %arg13[%c21_99, %c0_100], %68 {strides = array<i32>} : memref<30x35xf32, #tpu.memory_space<vmem>>, vector<1x35xf32>,
    %c0_101 = arith.constant 0 : index
    %c22 = arith.constant 22 : index
    %70 = vector.load %arg12[%c0_101, %c22] : memref<1x64xf32, #tpu.memory_space<vmem>>, vector<1x35xf32>
    %c22_102 = arith.constant 22 : index
    %c0_103 = arith.constant 0 : index
    %71 = vector.load %arg13[%c22_102, %c0_103] : memref<30x35xf32, #tpu.memory_space<vmem>>, vector<1x35xf32>
    tpu.vector_store %arg13[%c22_102, %c0_103], %70 {strides = array<i32>} : memref<30x35xf32, #tpu.memory_space<vmem>>, vector<1x35xf32>,
    %c0_104 = arith.constant 0 : index
    %c23 = arith.constant 23 : index
    %72 = vector.load %arg12[%c0_104, %c23] : memref<1x64xf32, #tpu.memory_space<vmem>>, vector<1x35xf32>
    %c23_105 = arith.constant 23 : index
    %c0_106 = arith.constant 0 : index
    %73 = vector.load %arg13[%c23_105, %c0_106] : memref<30x35xf32, #tpu.memory_space<vmem>>, vector<1x35xf32>
    tpu.vector_store %arg13[%c23_105, %c0_106], %72 {strides = array<i32>} : memref<30x35xf32, #tpu.memory_space<vmem>>, vector<1x35xf32>,
    %c0_107 = arith.constant 0 : index
    %c24 = arith.constant 24 : index
    %74 = vector.load %arg12[%c0_107, %c24] : memref<1x64xf32, #tpu.memory_space<vmem>>, vector<1x35xf32>
    %c24_108 = arith.constant 24 : index
    %c0_109 = arith.constant 0 : index
    %75 = vector.load %arg13[%c24_108, %c0_109] : memref<30x35xf32, #tpu.memory_space<vmem>>, vector<1x35xf32>
    tpu.vector_store %arg13[%c24_108, %c0_109], %74 {strides = array<i32>} : memref<30x35xf32, #tpu.memory_space<vmem>>, vector<1x35xf32>,
    %c0_110 = arith.constant 0 : index
    %c25 = arith.constant 25 : index
    %76 = vector.load %arg12[%c0_110, %c25] : memref<1x64xf32, #tpu.memory_space<vmem>>, vector<1x35xf32>
    %c25_111 = arith.constant 25 : index
    %c0_112 = arith.constant 0 : index
    %77 = vector.load %arg13[%c25_111, %c0_112] : memref<30x35xf32, #tpu.memory_space<vmem>>, vector<1x35xf32>
    tpu.vector_store %arg13[%c25_111, %c0_112], %76 {strides = array<i32>} : memref<30x35xf32, #tpu.memory_space<vmem>>, vector<1x35xf32>,
    %c0_113 = arith.constant 0 : index
    %c26 = arith.constant 26 : index
    %78 = vector.load %arg12[%c0_113, %c26] : memref<1x64xf32, #tpu.memory_space<vmem>>, vector<1x35xf32>
    %c26_114 = arith.constant 26 : index
    %c0_115 = arith.constant 0 : index
    %79 = vector.load %arg13[%c26_114, %c0_115] : memref<30x35xf32, #tpu.memory_space<vmem>>, vector<1x35xf32>
    tpu.vector_store %arg13[%c26_114, %c0_115], %78 {strides = array<i32>} : memref<30x35xf32, #tpu.memory_space<vmem>>, vector<1x35xf32>,
    %c0_116 = arith.constant 0 : index
    %c27 = arith.constant 27 : index
    %80 = vector.load %arg12[%c0_116, %c27] : memref<1x64xf32, #tpu.memory_space<vmem>>, vector<1x35xf32>
    %c27_117 = arith.constant 27 : index
    %c0_118 = arith.constant 0 : index
    %81 = vector.load %arg13[%c27_117, %c0_118] : memref<30x35xf32, #tpu.memory_space<vmem>>, vector<1x35xf32>
    tpu.vector_store %arg13[%c27_117, %c0_118], %80 {strides = array<i32>} : memref<30x35xf32, #tpu.memory_space<vmem>>, vector<1x35xf32>,
    %c0_119 = arith.constant 0 : index
    %c28 = arith.constant 28 : index
    %82 = vector.load %arg12[%c0_119, %c28] : memref<1x64xf32, #tpu.memory_space<vmem>>, vector<1x35xf32>
    %c28_120 = arith.constant 28 : index
    %c0_121 = arith.constant 0 : index
    %83 = vector.load %arg13[%c28_120, %c0_121] : memref<30x35xf32, #tpu.memory_space<vmem>>, vector<1x35xf32>
    tpu.vector_store %arg13[%c28_120, %c0_121], %82 {strides = array<i32>} : memref<30x35xf32, #tpu.memory_space<vmem>>, vector<1x35xf32>,
    %c0_122 = arith.constant 0 : index
    %c29 = arith.constant 29 : index
    %84 = vector.load %arg12[%c0_122, %c29] : memref<1x64xf32, #tpu.memory_space<vmem>>, vector<1x35xf32>
    %c29_123 = arith.constant 29 : index
    %c0_124 = arith.constant 0 : index
    %85 = vector.load %arg13[%c29_123, %c0_124] : memref<30x35xf32, #tpu.memory_space<vmem>>, vector<1x35xf32>
    tpu.vector_store %arg13[%c29_123, %c0_124], %84 {strides = array<i32>} : memref<30x35xf32, #tpu.memory_space<vmem>>, vector<1x35xf32>,
    %c0_125 = arith.constant 0 : index
    %c0_126 = arith.constant 0 : index
    %86 = vector.load %arg5[%c0_125, %c0_126] : memref<1x31xf32, #tpu.memory_space<vmem>>, vector<1x30xf32>
    %c0_127 = arith.constant 0 : index
    %c0_128 = arith.constant 0 : index
    %87 = vector.load %arg13[%c0_127, %c0_128] : memref<30x35xf32, #tpu.memory_space<vmem>>, vector<30x35xf32>
    %cst_129 = arith.constant dense<0.000000e+00> : vector<1x35xf32>
    %88 = tpu.matmul %86, %87, %cst_129 {dimension_numbers = #tpu.dot_dimension_numbers<[1], [0], [0], [1], [0, 0, 1, 1], [], []>} : vector<1x30xf32>, vector<30x35xf32>, vector<1x35xf32> -> vector<1x35xf32>
    %c0_130 = arith.constant 0 : index
    %c30 = arith.constant 30 : index
    %89 = vector.load %arg5[%c0_130, %c30] : memref<1x31xf32, #tpu.memory_space<vmem>>, vector<1x1xf32>
    %90 = vector.broadcast %89 : vector<1x1xf32> to vector<1x35xf32>
    %91 = arith.addf %88, %90 : vector<1x35xf32>
    %cst_131 = arith.constant 0.000000e+00 : f32
    %92 = vector.broadcast %cst_131 : f32 to vector<1x35xf32>
    %93 = arith.maximumf %91, %92 : vector<1x35xf32>
    %c0_132 = arith.constant 0 : index
    %c0_133 = arith.constant 0 : index
    %94 = vector.load %arg14[%c0_132, %c0_133] : memref<1x35xf32, #tpu.memory_space<vmem>>, vector<1x35xf32>
    tpu.vector_store %arg14[%c0_132, %c0_133], %93 {strides = array<i32>} : memref<1x35xf32, #tpu.memory_space<vmem>>, vector<1x35xf32>,
    %c0_i32 = arith.constant 0 : i32
    %95 = arith.cmpi eq, %arg1, %c0_i32 : i32
    %96 = arith.extui %95 : i1 to i32
    %c0_i32_134 = arith.constant 0 : i32
    %97 = arith.cmpi ne, %96, %c0_i32_134 : i32
    scf.if %97 {
      %cst_232 = arith.constant 0.000000e+00 : f32
      %162 = vector.broadcast %cst_232 : f32 to vector<1x19xf32>
      %c0_233 = arith.constant 0 : index
      %c0_234 = arith.constant 0 : index
      %163 = vector.load %arg14[%c0_233, %c0_234] : memref<1x35xf32, #tpu.memory_space<vmem>>, vector<1x19xf32>
      tpu.vector_store %arg14[%c0_233, %c0_234], %162 {strides = array<i32>} : memref<1x35xf32, #tpu.memory_space<vmem>>, vector<1x19xf32>,
    } else {
    }
    %c0_135 = arith.constant 0 : index
    %c0_136 = arith.constant 0 : index
    %98 = vector.load %arg14[%c0_135, %c0_136] : memref<1x35xf32, #tpu.memory_space<vmem>>, vector<1x16xf32>
    %c0_137 = arith.constant 0 : index
    %c0_138 = arith.constant 0 : index
    %99 = vector.load %arg15[%c0_137, %c0_138] : memref<20x16xf32, #tpu.memory_space<vmem>>, vector<1x16xf32>
    tpu.vector_store %arg15[%c0_137, %c0_138], %98 {strides = array<i32>} : memref<20x16xf32, #tpu.memory_space<vmem>>, vector<1x16xf32>,
    %c0_139 = arith.constant 0 : index
    %c1_140 = arith.constant 1 : index
    %100 = vector.load %arg14[%c0_139, %c1_140] : memref<1x35xf32, #tpu.memory_space<vmem>>, vector<1x16xf32>
    %c1_141 = arith.constant 1 : index
    %c0_142 = arith.constant 0 : index
    %101 = vector.load %arg15[%c1_141, %c0_142] : memref<20x16xf32, #tpu.memory_space<vmem>>, vector<1x16xf32>
    tpu.vector_store %arg15[%c1_141, %c0_142], %100 {strides = array<i32>} : memref<20x16xf32, #tpu.memory_space<vmem>>, vector<1x16xf32>,
    %c0_143 = arith.constant 0 : index
    %c2_144 = arith.constant 2 : index
    %102 = vector.load %arg14[%c0_143, %c2_144] : memref<1x35xf32, #tpu.memory_space<vmem>>, vector<1x16xf32>
    %c2_145 = arith.constant 2 : index
    %c0_146 = arith.constant 0 : index
    %103 = vector.load %arg15[%c2_145, %c0_146] : memref<20x16xf32, #tpu.memory_space<vmem>>, vector<1x16xf32>
    tpu.vector_store %arg15[%c2_145, %c0_146], %102 {strides = array<i32>} : memref<20x16xf32, #tpu.memory_space<vmem>>, vector<1x16xf32>,
    %c0_147 = arith.constant 0 : index
    %c3_148 = arith.constant 3 : index
    %104 = vector.load %arg14[%c0_147, %c3_148] : memref<1x35xf32, #tpu.memory_space<vmem>>, vector<1x16xf32>
    %c3_149 = arith.constant 3 : index
    %c0_150 = arith.constant 0 : index
    %105 = vector.load %arg15[%c3_149, %c0_150] : memref<20x16xf32, #tpu.memory_space<vmem>>, vector<1x16xf32>
    tpu.vector_store %arg15[%c3_149, %c0_150], %104 {strides = array<i32>} : memref<20x16xf32, #tpu.memory_space<vmem>>, vector<1x16xf32>,
    %c0_151 = arith.constant 0 : index
    %c4_152 = arith.constant 4 : index
    %106 = vector.load %arg14[%c0_151, %c4_152] : memref<1x35xf32, #tpu.memory_space<vmem>>, vector<1x16xf32>
    %c4_153 = arith.constant 4 : index
    %c0_154 = arith.constant 0 : index
    %107 = vector.load %arg15[%c4_153, %c0_154] : memref<20x16xf32, #tpu.memory_space<vmem>>, vector<1x16xf32>
    tpu.vector_store %arg15[%c4_153, %c0_154], %106 {strides = array<i32>} : memref<20x16xf32, #tpu.memory_space<vmem>>, vector<1x16xf32>,
    %c0_155 = arith.constant 0 : index
    %c5_156 = arith.constant 5 : index
    %108 = vector.load %arg14[%c0_155, %c5_156] : memref<1x35xf32, #tpu.memory_space<vmem>>, vector<1x16xf32>
    %c5_157 = arith.constant 5 : index
    %c0_158 = arith.constant 0 : index
    %109 = vector.load %arg15[%c5_157, %c0_158] : memref<20x16xf32, #tpu.memory_space<vmem>>, vector<1x16xf32>
    tpu.vector_store %arg15[%c5_157, %c0_158], %108 {strides = array<i32>} : memref<20x16xf32, #tpu.memory_space<vmem>>, vector<1x16xf32>,
    %c0_159 = arith.constant 0 : index
    %c6_160 = arith.constant 6 : index
    %110 = vector.load %arg14[%c0_159, %c6_160] : memref<1x35xf32, #tpu.memory_space<vmem>>, vector<1x16xf32>
    %c6_161 = arith.constant 6 : index
    %c0_162 = arith.constant 0 : index
    %111 = vector.load %arg15[%c6_161, %c0_162] : memref<20x16xf32, #tpu.memory_space<vmem>>, vector<1x16xf32>
    tpu.vector_store %arg15[%c6_161, %c0_162], %110 {strides = array<i32>} : memref<20x16xf32, #tpu.memory_space<vmem>>, vector<1x16xf32>,
    %c0_163 = arith.constant 0 : index
    %c7_164 = arith.constant 7 : index
    %112 = vector.load %arg14[%c0_163, %c7_164] : memref<1x35xf32, #tpu.memory_space<vmem>>, vector<1x16xf32>
    %c7_165 = arith.constant 7 : index
    %c0_166 = arith.constant 0 : index
    %113 = vector.load %arg15[%c7_165, %c0_166] : memref<20x16xf32, #tpu.memory_space<vmem>>, vector<1x16xf32>
    tpu.vector_store %arg15[%c7_165, %c0_166], %112 {strides = array<i32>} : memref<20x16xf32, #tpu.memory_space<vmem>>, vector<1x16xf32>,
    %c0_167 = arith.constant 0 : index
    %c8_168 = arith.constant 8 : index
    %114 = vector.load %arg14[%c0_167, %c8_168] : memref<1x35xf32, #tpu.memory_space<vmem>>, vector<1x16xf32>
    %c8_169 = arith.constant 8 : index
    %c0_170 = arith.constant 0 : index
    %115 = vector.load %arg15[%c8_169, %c0_170] : memref<20x16xf32, #tpu.memory_space<vmem>>, vector<1x16xf32>
    tpu.vector_store %arg15[%c8_169, %c0_170], %114 {strides = array<i32>} : memref<20x16xf32, #tpu.memory_space<vmem>>, vector<1x16xf32>,
    %c0_171 = arith.constant 0 : index
    %c9_172 = arith.constant 9 : index
    %116 = vector.load %arg14[%c0_171, %c9_172] : memref<1x35xf32, #tpu.memory_space<vmem>>, vector<1x16xf32>
    %c9_173 = arith.constant 9 : index
    %c0_174 = arith.constant 0 : index
    %117 = vector.load %arg15[%c9_173, %c0_174] : memref<20x16xf32, #tpu.memory_space<vmem>>, vector<1x16xf32>
    tpu.vector_store %arg15[%c9_173, %c0_174], %116 {strides = array<i32>} : memref<20x16xf32, #tpu.memory_space<vmem>>, vector<1x16xf32>,
    %c0_175 = arith.constant 0 : index
    %c10_176 = arith.constant 10 : index
    %118 = vector.load %arg14[%c0_175, %c10_176] : memref<1x35xf32, #tpu.memory_space<vmem>>, vector<1x16xf32>
    %c10_177 = arith.constant 10 : index
    %c0_178 = arith.constant 0 : index
    %119 = vector.load %arg15[%c10_177, %c0_178] : memref<20x16xf32, #tpu.memory_space<vmem>>, vector<1x16xf32>
    tpu.vector_store %arg15[%c10_177, %c0_178], %118 {strides = array<i32>} : memref<20x16xf32, #tpu.memory_space<vmem>>, vector<1x16xf32>,
    %c0_179 = arith.constant 0 : index
    %c11_180 = arith.constant 11 : index
    %120 = vector.load %arg14[%c0_179, %c11_180] : memref<1x35xf32, #tpu.memory_space<vmem>>, vector<1x16xf32>
    %c11_181 = arith.constant 11 : index
    %c0_182 = arith.constant 0 : index
    %121 = vector.load %arg15[%c11_181, %c0_182] : memref<20x16xf32, #tpu.memory_space<vmem>>, vector<1x16xf32>
    tpu.vector_store %arg15[%c11_181, %c0_182], %120 {strides = array<i32>} : memref<20x16xf32, #tpu.memory_space<vmem>>, vector<1x16xf32>,
    %c0_183 = arith.constant 0 : index
    %c12_184 = arith.constant 12 : index
    %122 = vector.load %arg14[%c0_183, %c12_184] : memref<1x35xf32, #tpu.memory_space<vmem>>, vector<1x16xf32>
    %c12_185 = arith.constant 12 : index
    %c0_186 = arith.constant 0 : index
    %123 = vector.load %arg15[%c12_185, %c0_186] : memref<20x16xf32, #tpu.memory_space<vmem>>, vector<1x16xf32>
    tpu.vector_store %arg15[%c12_185, %c0_186], %122 {strides = array<i32>} : memref<20x16xf32, #tpu.memory_space<vmem>>, vector<1x16xf32>,
    %c0_187 = arith.constant 0 : index
    %c13_188 = arith.constant 13 : index
    %124 = vector.load %arg14[%c0_187, %c13_188] : memref<1x35xf32, #tpu.memory_space<vmem>>, vector<1x16xf32>
    %c13_189 = arith.constant 13 : index
    %c0_190 = arith.constant 0 : index
    %125 = vector.load %arg15[%c13_189, %c0_190] : memref<20x16xf32, #tpu.memory_space<vmem>>, vector<1x16xf32>
    tpu.vector_store %arg15[%c13_189, %c0_190], %124 {strides = array<i32>} : memref<20x16xf32, #tpu.memory_space<vmem>>, vector<1x16xf32>,
    %c0_191 = arith.constant 0 : index
    %c14_192 = arith.constant 14 : index
    %126 = vector.load %arg14[%c0_191, %c14_192] : memref<1x35xf32, #tpu.memory_space<vmem>>, vector<1x16xf32>
    %c14_193 = arith.constant 14 : index
    %c0_194 = arith.constant 0 : index
    %127 = vector.load %arg15[%c14_193, %c0_194] : memref<20x16xf32, #tpu.memory_space<vmem>>, vector<1x16xf32>
    tpu.vector_store %arg15[%c14_193, %c0_194], %126 {strides = array<i32>} : memref<20x16xf32, #tpu.memory_space<vmem>>, vector<1x16xf32>,
    %c0_195 = arith.constant 0 : index
    %c15_196 = arith.constant 15 : index
    %128 = vector.load %arg14[%c0_195, %c15_196] : memref<1x35xf32, #tpu.memory_space<vmem>>, vector<1x16xf32>
    %c15_197 = arith.constant 15 : index
    %c0_198 = arith.constant 0 : index
    %129 = vector.load %arg15[%c15_197, %c0_198] : memref<20x16xf32, #tpu.memory_space<vmem>>, vector<1x16xf32>
    tpu.vector_store %arg15[%c15_197, %c0_198], %128 {strides = array<i32>} : memref<20x16xf32, #tpu.memory_space<vmem>>, vector<1x16xf32>,
    %c0_199 = arith.constant 0 : index
    %c16_200 = arith.constant 16 : index
    %130 = vector.load %arg14[%c0_199, %c16_200] : memref<1x35xf32, #tpu.memory_space<vmem>>, vector<1x16xf32>
    %c16_201 = arith.constant 16 : index
    %c0_202 = arith.constant 0 : index
    %131 = vector.load %arg15[%c16_201, %c0_202] : memref<20x16xf32, #tpu.memory_space<vmem>>, vector<1x16xf32>
    tpu.vector_store %arg15[%c16_201, %c0_202], %130 {strides = array<i32>} : memref<20x16xf32, #tpu.memory_space<vmem>>, vector<1x16xf32>,
    %c0_203 = arith.constant 0 : index
    %c17_204 = arith.constant 17 : index
    %132 = vector.load %arg14[%c0_203, %c17_204] : memref<1x35xf32, #tpu.memory_space<vmem>>, vector<1x16xf32>
    %c17_205 = arith.constant 17 : index
    %c0_206 = arith.constant 0 : index
    %133 = vector.load %arg15[%c17_205, %c0_206] : memref<20x16xf32, #tpu.memory_space<vmem>>, vector<1x16xf32>
    tpu.vector_store %arg15[%c17_205, %c0_206], %132 {strides = array<i32>} : memref<20x16xf32, #tpu.memory_space<vmem>>, vector<1x16xf32>,
    %c0_207 = arith.constant 0 : index
    %c18_208 = arith.constant 18 : index
    %134 = vector.load %arg14[%c0_207, %c18_208] : memref<1x35xf32, #tpu.memory_space<vmem>>, vector<1x16xf32>
    %c18_209 = arith.constant 18 : index
    %c0_210 = arith.constant 0 : index
    %135 = vector.load %arg15[%c18_209, %c0_210] : memref<20x16xf32, #tpu.memory_space<vmem>>, vector<1x16xf32>
    tpu.vector_store %arg15[%c18_209, %c0_210], %134 {strides = array<i32>} : memref<20x16xf32, #tpu.memory_space<vmem>>, vector<1x16xf32>,
    %c0_211 = arith.constant 0 : index
    %c19_212 = arith.constant 19 : index
    %136 = vector.load %arg14[%c0_211, %c19_212] : memref<1x35xf32, #tpu.memory_space<vmem>>, vector<1x16xf32>
    %c19_213 = arith.constant 19 : index
    %c0_214 = arith.constant 0 : index
    %137 = vector.load %arg15[%c19_213, %c0_214] : memref<20x16xf32, #tpu.memory_space<vmem>>, vector<1x16xf32>
    tpu.vector_store %arg15[%c19_213, %c0_214], %136 {strides = array<i32>} : memref<20x16xf32, #tpu.memory_space<vmem>>, vector<1x16xf32>,
    %c0_215 = arith.constant 0 : index
    %c0_216 = arith.constant 0 : index
    %138 = vector.load %arg6[%c0_215, %c0_216] : memref<1x21xf32, #tpu.memory_space<vmem>>, vector<1x20xf32>
    %c0_217 = arith.constant 0 : index
    %c0_218 = arith.constant 0 : index
    %139 = vector.load %arg15[%c0_217, %c0_218] : memref<20x16xf32, #tpu.memory_space<vmem>>, vector<20x16xf32>
    %cst_219 = arith.constant dense<0.000000e+00> : vector<1x16xf32>
    %140 = tpu.matmul %138, %139, %cst_219 {dimension_numbers = #tpu.dot_dimension_numbers<[1], [0], [0], [1], [0, 0, 1, 1], [], []>} : vector<1x20xf32>, vector<20x16xf32>, vector<1x16xf32> -> vector<1x16xf32>
    %c0_220 = arith.constant 0 : index
    %c0_221 = arith.constant 0 : index
    %c0_222 = arith.constant 0 : index
    %141 = vector.load %arg4[%c0_220, %c0_221, %c0_222] : memref<1x8x1xf32, #tpu.memory_space<vmem>>, vector<1x8x1xf32>
    %142 = vector.shape_cast %141 : vector<1x8x1xf32> to vector<8x1xf32>
    %c0_223 = arith.constant 0 : index
    %c19_224 = arith.constant 19 : index
    %143 = vector.load %arg14[%c0_223, %c19_224] : memref<1x35xf32, #tpu.memory_space<vmem>>, vector<1x16xf32>
    %144 = vector.broadcast %142 : vector<8x1xf32> to vector<8x16xf32>
    %145 = vector.broadcast %143 : vector<1x16xf32> to vector<8x16xf32>
    %146 = arith.mulf %144, %145 : vector<8x16xf32>
    %147 = vector.broadcast %142 : vector<8x1xf32> to vector<8x16xf32>
    %148 = vector.broadcast %140 : vector<1x16xf32> to vector<8x16xf32>
    %149 = arith.mulf %147, %148 : vector<8x16xf32>
    %c0_225 = arith.constant 0 : index
    %c20_226 = arith.constant 20 : index
    %150 = vector.load %arg6[%c0_225, %c20_226] : memref<1x21xf32, #tpu.memory_space<vmem>>, vector<1x1xf32>
    %151 = vector.broadcast %150 : vector<1x1xf32> to vector<8x16xf32>
    %152 = arith.addf %149, %151 : vector<8x16xf32>
    %cst_227 = arith.constant 0.000000e+00 : f32
    %153 = vector.broadcast %cst_227 : f32 to vector<8x16xf32>
    %154 = arith.maximumf %152, %153 : vector<8x16xf32>
    %155 = arith.subf %25, %154 : vector<8x16xf32>
    %cst_228 = arith.constant 0.000000e+00 : f32
    %156 = vector.broadcast %cst_228 : f32 to vector<8x16xf32>
    %157 = arith.maximumf %155, %156 : vector<8x16xf32>
    %158 = arith.addf %146, %157 : vector<8x16xf32>
    %c0_229 = arith.constant 0 : index
    %c0_230 = arith.constant 0 : index
    %c0_231 = arith.constant 0 : index
    %159 = vector.load %arg9[%c0_229, %c0_230, %c0_231] : memref<1x8x16xf32, #tpu.memory_space<vmem>>, vector<1x8x16xf32>
    %160 = vector.shape_cast %159 : vector<1x8x16xf32> to vector<8x16xf32>
    %161 = vector.shape_cast %158 : vector<8x16xf32> to vector<1x8x16xf32>
    tpu.vector_store %arg9[%c0_229, %c0_230, %c0_231], %161 {strides = array<i32>} : memref<1x8x16xf32, #tpu.memory_space<vmem>>, vector<1x8x16xf32>,
    return
  }
  func.func @transform_0(%arg0: i32, %arg1: i32) -> (i32, i32) {
    %c0_i32 = arith.constant 0 : i32
    %c0_i32_0 = arith.constant 0 : i32
    %c0_i32_1 = arith.constant 0 : i32
    return %c0_i32, %c0_i32_0 : i32, i32
  }
  func.func @transform_1(%arg0: i32, %arg1: i32) -> (i32, i32) {
    %c0_i32 = arith.constant 0 : i32
    %c0_i32_0 = arith.constant 0 : i32
    %c0_i32_1 = arith.constant 0 : i32
    return %c0_i32, %c0_i32_0 : i32, i32
  }
  func.func @transform_2(%arg0: i32, %arg1: i32) -> (i32, i32, i32) {
    %c0_i32 = arith.constant 0 : i32
    %c0_i32_0 = arith.constant 0 : i32
    %c0_i32_1 = arith.constant 0 : i32
    return %arg0, %c0_i32, %c0_i32_0 : i32, i32, i32
  }
  func.func @transform_3(%arg0: i32, %arg1: i32) -> (i32, i32) {
    %c0_i32 = arith.constant 0 : i32
    %c0_i32_0 = arith.constant 0 : i32
    %c0_i32_1 = arith.constant 0 : i32
    return %c0_i32, %c0_i32_0 : i32, i32
  }
  func.func @transform_4(%arg0: i32, %arg1: i32) -> (i32, i32) {
    %c0_i32 = arith.constant 0 : i32
    %c0_i32_0 = arith.constant 0 : i32
    %c0_i32_1 = arith.constant 0 : i32
    return %c0_i32, %c0_i32_0 : i32, i32
  }
  func.func @transform_5(%arg0: i32, %arg1: i32) -> (i32, i32, i32) {
    %c0_i32 = arith.constant 0 : i32
    %c0_i32_0 = arith.constant 0 : i32
    return %arg0, %c0_i32, %arg1 : i32, i32, i32
  }
  func.func @transform_6(%arg0: i32, %arg1: i32) -> (i32, i32, i32) {
    %c0_i32 = arith.constant 0 : i32
    %c0_i32_0 = arith.constant 0 : i32
    return %arg0, %c0_i32, %arg1 : i32, i32, i32
  }
  func.func @transform_7(%arg0: i32, %arg1: i32) -> (i32, i32, i32) {
    %c0_i32 = arith.constant 0 : i32
    %c0_i32_0 = arith.constant 0 : i32
    return %arg0, %c0_i32, %arg1 : i32, i32, i32
  }
}

</mosaic_0001>

<llo_original>
// kernel: tpu_custom_call.1
$region0: #{tpu_custom_call.1}
  #allocation0 [shape = 'u32[]', space=smem, size = 0x4, offset = 0x4, fixed_abs, tag = 'smem constant byte address 0x4 - core index']
  #allocation1 [shape = 'u32[144,128]{1,0:T(1,128)}', space=vmem, size = 0x12000, scoped, tag = 'internal scratch']
  #allocation2 [shape = 'f32[4,18]{1,0:T(4,128)}', space=vmem, size = 0x800, scoped, tag = 'scratch operand']
  #allocation3 [shape = 'f32[12,16]{1,0:T(8,128)}', space=vmem, size = 0x2000, scoped, tag = 'scratch operand']
  #allocation4 [shape = 'f32[1,64]{1,0:T(1,128)}', space=vmem, size = 0x200, scoped, tag = 'scratch operand']
  #allocation5 [shape = 'f32[30,35]{1,0:T(8,128)}', space=vmem, size = 0x4000, scoped, tag = 'scratch operand']
  #allocation6 [shape = 'f32[1,35]{1,0:T(1,128)}', space=vmem, size = 0x200, scoped, tag = 'scratch operand']
  #allocation7 [shape = 'f32[20,16]{1,0:T(8,128)}', space=vmem, size = 0x3000, scoped, tag = 'scratch operand']
  %s0 = inlined_call_operand.vmem [shape: f32[8,12], index: 0, kind: input, shape index: {}]
  %s1 = inlined_call_operand.vmem [shape: f32[8,1], index: 1, kind: input, shape index: {}]
  %s2 = inlined_call_operand.vmem [shape: f32[2,8,1], index: 2, kind: input, shape index: {}]
  %s3 = inlined_call_operand.vmem [shape: f32[1,31], index: 3, kind: input, shape index: {}]
  %s4 = inlined_call_operand.vmem [shape: f32[1,21], index: 4, kind: input, shape index: {}]
  %s5 = inlined_call_operand.vmem [shape: f32[2,4,16], index: 5, kind: input, shape index: {}]
  %s6 = inlined_call_operand.vmem [shape: f32[2,1,16], index: 6, kind: input, shape index: {}]
  %s7 = inlined_call_operand.hbm [shape: f32[2,8,16], index: 7, kind: output, shape index: {}]
  %s8 = sld [smem:[#allocation0]]
  $region65: #{tpu_custom_call.1} parent=0
    _
  %s10 = ssub.s32 1, %s8
  %s11 = scalar_select 0, %s10, %s8
  $region1: #{tpu_custom_call.1} parent=0
    #allocation8 [shape = 'u8[8192]{0}', space=vmem, size = 0x2000, scoped, tag = 'output window, operand 0']
    #allocation9 [shape = 's32[2]{0}', space=sflag, size = 0x8, scoped, tag = 'scoped memory for tpu_custom_call.1']
    %12 = vsyncpa [#allocation9], 0
    %s13 = scalar_lea.sflag [#allocation9], 1
    %14 = vsyncpa %s13, 0
    loop: start=0, step=1, limit=4
    $region2: #{tpu_custom_call.1} parent=1 // loop_pre_header
      _
    $region3: #{tpu_custom_call.1} parent=1 // loop_header
      %s16 = sphi 0, %s20
      %p17 = scmp.ge.s32.totalorder %s16, 4
      %s23 = sphi 0, %s35
      %s24 = sphi 0, %s31
      %s25 = sphi 0, %s23
      %s26 = sphi 0, %s24
      %s27 = sphi 0, %s25
      %s28 = sphi 0, %s26
      %s36 = sphi 0, %s36
      %s38 = sphi 0, %s36
      %s39 = sphi 0, %s38
      %s53 = sphi 0, %s39
      %s57 = sphi 0, %s57
      %s59 = sphi 0, %s57
      %s60 = sphi 0, %s59
      %s74 = sphi 0, %s60
      %s80 = sphi 0, %s82
      %s83 = sphi 0, %s80
      %s84 = sphi 0, %s83
      %s100 = sphi 0, %s84
      %s104 = sphi 0, %s104
      %s106 = sphi 0, %s104
      %s107 = sphi 0, %s106
      %s121 = sphi 0, %s107
      %s125 = sphi 0, %s125
      %s127 = sphi 0, %s125
      %s128 = sphi 0, %s127
      %s142 = sphi 0, %s128
      %s150 = sphi 0, %s152
      %s153 = sphi 0, %s150
      %s154 = sphi 0, %s153
      %s170 = sphi 0, %s154
      %s178 = sphi 0, %s180
      %s181 = sphi 0, %s178
      %s182 = sphi 0, %s181
      %s198 = sphi 0, %s182
      %s206 = sphi 0, %s208
      %s209 = sphi 0, %s206
      %s210 = sphi 0, %s209
      %s226 = sphi 0, %s210
    $region4: #{tpu_custom_call.1} parent=1 // loop_header_branch
      %19 = sbr.rel (%p17) target = $region8
    $region5: #{tpu_custom_call.1} parent=1 // loop_body
      %s21 = ssub.s32 %s16, 1
      %s22 = ssub.s32 %s16, 2
      %s29 = sadd.s32 1, %s24
      %p30 = scmp.ge.s32.totalorder %s29, 1
      %s31 = scalar_select %p30, 0, %s29
      %s32 = sadd.s32 1, %s23
      %s33 = scalar_select %p30, %s32, %s23
      %p34 = scmp.ge.s32.totalorder %s33, 2
      %s35 = scalar_select %p34, 0, %s33
      %s37 = sadd.s32 %s36, 1
      %p40 = scmp.eq.s32.totalorder %s16, 1
      %p41 = scmp.ne.s32.totalorder %s36, %s38
      %p42 = scmp.eq.s32.totalorder %s16, 0
      %p43 = por %p41, %p42
      %p44 = scmp.ne.s32.totalorder %s36, %s38
      %p45 = scmp.eq.s32.totalorder %s21, 1
      %p46 = por %p44, %p45
      %p47 = scmp.ne.s32.totalorder %s38, %s39
      %p48 = scmp.eq.s32.totalorder %s21, 0
      %p49 = por %p47, %p48
      %p50 = scmp.ne.s32.totalorder %s38, %s39
      %p51 = scmp.eq.s32.totalorder %s22, 1
      %p52 = por %p50, %p51
      %p54 = scmp.ne.s32.totalorder %s39, %s53
      %p55 = scmp.eq.s32.totalorder %s22, 0
      %p56 = por %p54, %p55
      %s58 = sadd.s32 %s57, 1
      %p61 = scmp.eq.s32.totalorder %s16, 1
      %p62 = scmp.ne.s32.totalorder %s57, %s59
      %p63 = scmp.eq.s32.totalorder %s16, 0
      %p64 = por %p62, %p63
      %p65 = scmp.ne.s32.totalorder %s57, %s59
      %p66 = scmp.eq.s32.totalorder %s21, 1
      %p67 = por %p65, %p66
      %p68 = scmp.ne.s32.totalorder %s59, %s60
      %p69 = scmp.eq.s32.totalorder %s21, 0
      %p70 = por %p68, %p69
      %p71 = scmp.ne.s32.totalorder %s59, %s60
      %p72 = scmp.eq.s32.totalorder %s22, 1
      %p73 = por %p71, %p72
      %p75 = scmp.ne.s32.totalorder %s60, %s74
      %p76 = scmp.eq.s32.totalorder %s22, 0
      %p77 = por %p75, %p76
      %s78 = ssub.s32 %s23, %s35
      %p79 = scmp.eq.s32.totalorder %s78, 0
      %s81 = sadd.s32 %s80, 1
      %s82 = scalar_select %p79, %s80, %s81
      %p85 = pneg %p79
      %p86 = scmp.eq.s32.totalorder %s16, 1
      %p87 = por %p85, %p86
      %p88 = scmp.ne.s32.totalorder %s80, %s83
      %p89 = scmp.eq.s32.totalorder %s16, 0
      %p90 = por %p88, %p89
      %p91 = scmp.ne.s32.totalorder %s80, %s83
      %p92 = scmp.eq.s32.totalorder %s21, 1
      %p93 = por %p91, %p92
      %p94 = scmp.ne.s32.totalorder %s83, %s84
      %p95 = scmp.eq.s32.totalorder %s21, 0
      %p96 = por %p94, %p95
      %p97 = scmp.ne.s32.totalorder %s83, %s84
      %p98 = scmp.eq.s32.totalorder %s22, 1
      %p99 = por %p97, %p98
      %p101 = scmp.ne.s32.totalorder %s84, %s100
      %p102 = scmp.eq.s32.totalorder %s22, 0
      %p103 = por %p101, %p102
      %s105 = sadd.s32 %s104, 1
      %p108 = scmp.eq.s32.totalorder %s16, 1
      %p109 = scmp.ne.s32.totalorder %s104, %s106
      %p110 = scmp.eq.s32.totalorder %s16, 0
      %p111 = por %p109, %p110
      %p112 = scmp.ne.s32.totalorder %s104, %s106
      %p113 = scmp.eq.s32.totalorder %s21, 1
      %p114 = por %p112, %p113
      %p115 = scmp.ne.s32.totalorder %s106, %s107
      %p116 = scmp.eq.s32.totalorder %s21, 0
      %p117 = por %p115, %p116
      %p118 = scmp.ne.s32.totalorder %s106, %s107
      %p119 = scmp.eq.s32.totalorder %s22, 1
      %p120 = por %p118, %p119
      %p122 = scmp.ne.s32.totalorder %s107, %s121
      %p123 = scmp.eq.s32.totalorder %s22, 0
      %p124 = por %p122, %p123
      %s126 = sadd.s32 %s125, 1
      %p129 = scmp.eq.s32.totalorder %s16, 1
      %p130 = scmp.ne.s32.totalorder %s125, %s127
      %p131 = scmp.eq.s32.totalorder %s16, 0
      %p132 = por %p130, %p131
      %p133 = scmp.ne.s32.totalorder %s125, %s127
      %p134 = scmp.eq.s32.totalorder %s21, 1
      %p135 = por %p133, %p134
      %p136 = scmp.ne.s32.totalorder %s127, %s128
      %p137 = scmp.eq.s32.totalorder %s21, 0
      %p138 = por %p136, %p137
      %p139 = scmp.ne.s32.totalorder %s127, %s128
      %p140 = scmp.eq.s32.totalorder %s22, 1
      %p141 = por %p139, %p140
      %p143 = scmp.ne.s32.totalorder %s128, %s142
      %p144 = scmp.eq.s32.totalorder %s22, 0
      %p145 = por %p143, %p144
      %s146 = ssub.s32 %s23, %s35
      %s147 = ssub.s32 %s24, %s31
      %s148 = sor.u32 %s146, %s147
      %p149 = scmp.eq.s32.totalorder %s148, 0
      %s151 = sadd.s32 %s150, 1
      %s152 = scalar_select %p149, %s150, %s151
      %p155 = pneg %p149
      %p156 = scmp.eq.s32.totalorder %s16, 1
      %p157 = por %p155, %p156
      %p158 = scmp.ne.s32.totalorder %s150, %s153
      %p159 = scmp.eq.s32.totalorder %s16, 0
      %p160 = por %p158, %p159
      %p161 = scmp.ne.s32.totalorder %s150, %s153
      %p162 = scmp.eq.s32.totalorder %s21, 1
      %p163 = por %p161, %p162
      %p164 = scmp.ne.s32.totalorder %s153, %s154
      %p165 = scmp.eq.s32.totalorder %s21, 0
      %p166 = por %p164, %p165
      %p167 = scmp.ne.s32.totalorder %s153, %s154
      %p168 = scmp.eq.s32.totalorder %s22, 1
      %p169 = por %p167, %p168
      %p171 = scmp.ne.s32.totalorder %s154, %s170
      %p172 = scmp.eq.s32.totalorder %s22, 0
      %p173 = por %p171, %p172
      %s174 = ssub.s32 %s23, %s35
      %s175 = ssub.s32 %s24, %s31
      %s176 = sor.u32 %s174, %s175
      %p177 = scmp.eq.s32.totalorder %s176, 0
      %s179 = sadd.s32 %s178, 1
      %s180 = scalar_select %p177, %s178, %s179
      %p183 = pneg %p177
      %p184 = scmp.eq.s32.totalorder %s16, 1
      %p185 = por %p183, %p184
      %p186 = scmp.ne.s32.totalorder %s178, %s181
      %p187 = scmp.eq.s32.totalorder %s16, 0
      %p188 = por %p186, %p187
      %p189 = scmp.ne.s32.totalorder %s178, %s181
      %p190 = scmp.eq.s32.totalorder %s21, 1
      %p191 = por %p189, %p190
      %p192 = scmp.ne.s32.totalorder %s181, %s182
      %p193 = scmp.eq.s32.totalorder %s21, 0
      %p194 = por %p192, %p193
      %p195 = scmp.ne.s32.totalorder %s181, %s182
      %p196 = scmp.eq.s32.totalorder %s22, 1
      %p197 = por %p195, %p196
      %p199 = scmp.ne.s32.totalorder %s182, %s198
      %p200 = scmp.eq.s32.totalorder %s22, 0
      %p201 = por %p199, %p200
      %s202 = ssub.s32 %s23, %s35
      %s203 = ssub.s32 %s24, %s31
      %s204 = sor.u32 %s202, %s203
      %p205 = scmp.eq.s32.totalorder %s204, 0
      %s207 = sadd.s32 %s206, 1
      %s208 = scalar_select %p205, %s206, %s207
      %p211 = pneg %p205
      %p212 = scmp.eq.s32.totalorder %s16, 1
      %p213 = por %p211, %p212
      %p214 = scmp.ne.s32.totalorder %s206, %s209
      %p215 = scmp.eq.s32.totalorder %s16, 0
      %p216 = por %p214, %p215
      %p217 = scmp.ne.s32.totalorder %s206, %s209
      %p218 = scmp.eq.s32.totalorder %s21, 1
      %p219 = por %p217, %p218
      %p220 = scmp.ne.s32.totalorder %s209, %s210
      %p221 = scmp.eq.s32.totalorder %s21, 0
      %p222 = por %p220, %p221
      %p223 = scmp.ne.s32.totalorder %s209, %s210
      %p224 = scmp.eq.s32.totalorder %s22, 1
      %p225 = por %p223, %p224
      %p227 = scmp.ne.s32.totalorder %s210, %s226
      %p228 = scmp.eq.s32.totalorder %s22, 0
      %p229 = por %p227, %p228
      %p230 = scmp.le.s32.totalorder 1, %s16
      %p231 = scmp.lt.s32.totalorder %s16, 3
      %p232 = pnand %p230, %p231
      %p233 = pneg %p232
      // Predicated region
      $region9: #{tpu_custom_call.1} parent=5 // pred_check
        _
      $region10: #{tpu_custom_call.1} parent=5 // pred_check_branch
        %235 = sbr.rel (%p232) target = $region12
      $region11: #{tpu_custom_call.1} parent=5 // pred_region
        %s236 = ssub.s32 %s16, 1
        // Predicated region
        $region13: #{tpu_custom_call.1} parent=11 // pred_check
          %p237 = pneg %p49
        $region14: #{tpu_custom_call.1} parent=11 // pred_check_branch
          %239 = sbr.rel (%p237) target = $region16
        $region15: #{tpu_custom_call.1} parent=11 // pred_region
          _
        $region16: #{tpu_custom_call.1} parent=11 // pred_fallthru
          _
        // Predicated region
        $region17: #{tpu_custom_call.1} parent=11 // pred_check
          %p240 = pneg %p70
        $region18: #{tpu_custom_call.1} parent=11 // pred_check_branch
          %242 = sbr.rel (%p240) target = $region20
        $region19: #{tpu_custom_call.1} parent=11 // pred_region
          _
        $region20: #{tpu_custom_call.1} parent=11 // pred_fallthru
          _
        // Predicated region
        $region21: #{tpu_custom_call.1} parent=11 // pred_check
          %p243 = pneg %p117
        $region22: #{tpu_custom_call.1} parent=11 // pred_check_branch
          %245 = sbr.rel (%p243) target = $region24
        $region23: #{tpu_custom_call.1} parent=11 // pred_region
          _
        $region24: #{tpu_custom_call.1} parent=11 // pred_fallthru
          _
        // Predicated region
        $region25: #{tpu_custom_call.1} parent=11 // pred_check
          %p246 = pneg %p138
        $region26: #{tpu_custom_call.1} parent=11 // pred_check_branch
          %248 = sbr.rel (%p246) target = $region28
        $region27: #{tpu_custom_call.1} parent=11 // pred_region
          _
        $region28: #{tpu_custom_call.1} parent=11 // pred_fallthru
          _
      $region12: #{tpu_custom_call.1} parent=5 // pred_fallthru
        _
      %p249 = scmp.lt.s32.totalorder %s16, 2
      // Predicated region
      $region29: #{tpu_custom_call.1} parent=5 // pred_check
        %p250 = pneg %p249
      $region30: #{tpu_custom_call.1} parent=5 // pred_check_branch
        %252 = sbr.rel (%p250) target = $region32
      $region31: #{tpu_custom_call.1} parent=5 // pred_region
        // Predicated region
        $region33: #{tpu_custom_call.1} parent=31 // pred_check
          %p253 = pneg %p90
        $region34: #{tpu_custom_call.1} parent=31 // pred_check_branch
          %255 = sbr.rel (%p253) target = $region36
        $region35: #{tpu_custom_call.1} parent=31 // pred_region
          %p256 = scmp.lt.s32.totalorder %s23, 1
          %s257 = scalar_select %p256, %s23, 1
          %s258 = smul.addr %s257, 8
          %s259 = scalar_lea.vmem %s2, %s258
        $region36: #{tpu_custom_call.1} parent=31 // pred_fallthru
          _
        // Predicated region
        $region37: #{tpu_custom_call.1} parent=31 // pred_check
          %p260 = pneg %p160
        $region38: #{tpu_custom_call.1} parent=31 // pred_check_branch
          %262 = sbr.rel (%p260) target = $region40
        $region39: #{tpu_custom_call.1} parent=31 // pred_region
          %p263 = scmp.lt.s32.totalorder %s23, 1
          %s264 = scalar_select %p263, %s23, 1
          %p265 = scmp.lt.s32.totalorder %s24, 0
          %s266 = scalar_select %p265, %s24, 0
          %s267 = sadd.s32 %s266, %s264
          %s268 = smul.addr %s267, 4
          %s269 = scalar_lea.vmem %s5, %s268
        $region40: #{tpu_custom_call.1} parent=31 // pred_fallthru
          _
        // Predicated region
        $region41: #{tpu_custom_call.1} parent=31 // pred_check
          %p270 = pneg %p188
        $region42: #{tpu_custom_call.1} parent=31 // pred_check_branch
          %272 = sbr.rel (%p270) target = $region44
        $region43: #{tpu_custom_call.1} parent=31 // pred_region
          %p273 = scmp.lt.s32.totalorder %s23, 1
          %s274 = scalar_select %p273, %s23, 1
          %p275 = scmp.lt.s32.totalorder %s24, 0
          %s276 = scalar_select %p275, %s24, 0
          %s277 = sadd.s32 %s276, %s274
          %s278 = scalar_lea.vmem %s6, %s277
        $region44: #{tpu_custom_call.1} parent=31 // pred_fallthru
          _
      $region32: #{tpu_custom_call.1} parent=5 // pred_fallthru
        _
      %p279 = scmp.le.s32.totalorder 1, %s16
      %p280 = scmp.lt.s32.totalorder %s16, 3
      %p281 = pnand %p279, %p280
      %p282 = pneg %p281
      // Predicated region
      $region45: #{tpu_custom_call.1} parent=5 // pred_check
        _
      $region46: #{tpu_custom_call.1} parent=5 // pred_check_branch
        %284 = sbr.rel (%p281) target = $region48
      $region47: #{tpu_custom_call.1} parent=5 // pred_region
        %s285 = ssub.s32 %s16, 1
        %p286 = pneg %p49
        %p287 = pneg %p46
        %p288 = pneg %p70
        %p289 = pneg %p67
        %p290 = scmp.lt.s32.totalorder %s25, 1
        %s291 = scalar_select %p290, %s25, 1
        %s292 = smul.addr %s291, 8
        %s293 = scalar_lea.vmem %s2, %s292
        %p294 = pneg %p96
        %p295 = pneg %p93
        %p296 = pneg %p117
        %p297 = pneg %p114
        %p298 = pneg %p138
        %p299 = pneg %p135
        %p300 = scmp.lt.s32.totalorder %s25, 1
        %s301 = scalar_select %p300, %s25, 1
        %p302 = scmp.lt.s32.totalorder %s26, 0
        %s303 = scalar_select %p302, %s26, 0
        %s304 = sadd.s32 %s303, %s301
        %s305 = smul.addr %s304, 4
        %s306 = scalar_lea.vmem %s5, %s305
        %p307 = pneg %p166
        %p308 = pneg %p163
        %p309 = scmp.lt.s32.totalorder %s25, 1
        %s310 = scalar_select %p309, %s25, 1
        %p311 = scmp.lt.s32.totalorder %s26, 0
        %s312 = scalar_select %p311, %s26, 0
        %s313 = sadd.s32 %s312, %s310
        %s314 = scalar_lea.vmem %s6, %s313
        %p315 = pneg %p194
        %p316 = pneg %p191
        %p317 = pneg %p222
        %p318 = pneg %p219
        %s319 = sand.u32 %s209, 1
        %s320 = scalar_lea.sflag [#allocation9], %s319
        %s321 = sand.u32 %s209, 1
        %s322 = smul.addr %s321, 8
        %s323 = scalar_lea.vmem [#allocation8], %s322
        %p324 = scmp.lt.s32.totalorder %s25, 1
        %s325 = scalar_select %p324, %s25, 1
        %s326 = smul.addr %s325, 8
        %s327 = scalar_lea.vmem %s2, %s326
        %p328 = scmp.lt.s32.totalorder %s25, 1
        %s329 = scalar_select %p328, %s25, 1
        %p330 = scmp.lt.s32.totalorder %s26, 0
        %s331 = scalar_select %p330, %s26, 0
        %s332 = sadd.s32 %s331, %s329
        %s333 = smul.addr %s332, 4
        %s334 = scalar_lea.vmem %s5, %s333
        %p335 = scmp.lt.s32.totalorder %s25, 1
        %s336 = scalar_select %p335, %s25, 1
        %p337 = scmp.lt.s32.totalorder %s26, 0
        %s338 = scalar_select %p337, %s26, 0
        %s339 = sadd.s32 %s338, %s336
        %s340 = scalar_lea.vmem %s6, %s339
        %vm341 = vcmask 11264
        %342 = vst.msk [vmem:[#allocation2] sm:$0xf] %vm341, 0.0
        %vm343 = vcmask 385024
        %344 = vst.msk [vmem:[#allocation4] sm:$0x1] %vm343, 0.0
        %v345 = vld [vmem:[%s334] sm:$0xf]
        %347 = vrot.lane.b32.xlu0 %v345, 2
        %v348 = vpop.permute.xlu0 %347
        %vm350 = vcmask 142352
        %351 = vst.msk [vmem:[#allocation2] sm:$0xf] %vm350, %v348
        %v352 = vld [vmem:[%s340] sm:$0x1]
        %v353 = vmin.f32 %v352, 1.0
        %v355 = vlaneseq
        %v356 = vshrl.u32 %v355, 7
        %v357 = vsub.s32 0, %v356
        %v358 = vrot.slane %v353, %v357
        %359 = vrot.lane.b32.xlu0 %v358, 48
        %v360 = vpop.permute.xlu0 %359
        %vm362 = vcmask 516480
        %363 = vst.msk [vmem:[#allocation4] sm:$0x1] %vm362, %v360
        %v364 = vld [vmem:[#allocation2] sm:$0xf]
        %vm365 = vcmask 125952
        %366 = vst.msk [vmem:[#allocation3] sm:$0xf] %vm365, %v364
        %v367 = vld [vmem:[#allocation2] sm:$0xf]
        %369 = vrot.lane.b32.xlu0 %v367, 127
        %v370 = vpop.permute.xlu0 %369
        %372 = vst.msk [vmem:[#allocation3 + $0x4] sm:$0xf] %vm365, %v370
        %v373 = vld [vmem:[#allocation2] sm:$0xf]
        %375 = vrot.lane.b32.xlu0 %v373, 126
        %v376 = vpop.permute.xlu0 %375
        %378 = vst.msk [vmem:[#allocation3 + $0x8] sm:$0xf] %vm365, %v376
        %v379 = vld [vmem:[%s0] sm:$0xff]
        %v380 = vld [vmem:[#allocation3] sm:$0xff]
        %v381 = vld [vmem:[#allocation3 + $0x8] sm:$0xf]
        %v382 = vld [vmem:[%s1] sm:$0xff]
        %384 = vset.pattern.permute.xlu0 0
        %385 = vperm.xlu0 %384, %v382
        %v386 = vpop.permute.xlu0 %385
        %vm388 = vcmask 97280
        %v390 = vsel %vm388, %v379, 0
        %vm392 = vcmask 1043456
        %v394 = vsel %vm392, %v381, 0
        %396 = vmatprep.subr.mxu0 0.0
        %397 = vmatpush1.msra.mxu0 %v380
        %398 = vmatprep.subr.mxu0 0.0
        %399 = vmatpush1.msra.mxu0 %v394
        %400 = vmatprep.subr.mxu0 0.0
        %401 = vmatpush1.msra.mxu0 0.0
        %402 = vmatprep.subr.mxu0 0.0
        %403 = vmatpush1.msra.mxu0 0.0
        %404 = vmatprep.subr.mxu0 0.0
        %405 = vmatpush1.msra.mxu0 0.0
        %406 = vmatprep.subr.mxu0 0.0
        %407 = vmatpush1.msra.mxu0 0.0
        %408 = vmatprep.subr.mxu0 0.0
        %409 = vmatpush1.msra.mxu0 0.0
        %410 = vmatprep.subr.mxu0 0.0
        %411 = vmatpush1.msra.mxu0 0.0
        %412 = vmatprep.subr.mxu0 0.0
        %413 = vmatpush1.msra.mxu0 0.0
        %414 = vmatprep.subr.mxu0 0.0
        %415 = vmatpush1.msra.mxu0 0.0
        %416 = vmatprep.subr.mxu0 0.0
        %417 = vmatpush1.msra.mxu0 0.0
        %418 = vmatprep.subr.mxu0 0.0
        %419 = vmatpush1.msra.mxu0 0.0
        %420 = vmatprep.subr.mxu0 0.0
        %421 = vmatpush1.msra.mxu0 0.0
        %422 = vmatprep.subr.mxu0 0.0
        %423 = vmatpush1.msra.mxu0 0.0
        %424 = vmatprep.subr.mxu0 0.0
        %425 = vmatpush1.msra.mxu0 0.0
        %426 = vmatprep.subr.mxu0 0.0
        %427 = vmatpush1.msra.mxu0 0.0
        %428 = vmatprep.subr.mxu0 0.0
        %429 = vmatpush1.msra.mxu0 0.0
        %430 = vmatprep.subr.mxu0 0.0
        %431 = vmatpush1.msra.mxu0 0.0
        %432 = vmatprep.subr.mxu0 0.0
        %433 = vmatpush1.msra.mxu0 0.0
        %434 = vmatprep.subr.mxu0 0.0
        %435 = vmatpush1.msra.mxu0 0.0
        %436 = vmatprep.subr.mxu0 0.0
        %437 = vmatpush1.msra.mxu0 0.0
        %438 = vmatprep.subr.mxu0 0.0
        %439 = vmatpush1.msra.mxu0 0.0
        %440 = vmatprep.subr.mxu0 0.0
        %441 = vmatpush1.msra.mxu0 0.0
        %442 = vmatprep.subr.mxu0 0.0
        %443 = vmatpush1.msra.mxu0 0.0
        %444 = vmatprep.subr.mxu0 0.0
        %445 = vmatpush1.msra.mxu0 0.0
        %446 = vmatprep.subr.mxu0 0.0
        %447 = vmatpush1.msra.mxu0 0.0
        %448 = vmatprep.subr.mxu0 0.0
        %449 = vmatpush1.msra.mxu0 0.0
        %450 = vmatprep.subr.mxu0 0.0
        %451 = vmatpush1.msra.mxu0 0.0
        %452 = vmatprep.subr.mxu0 0.0
        %453 = vmatpush1.msra.mxu0 0.0
        %454 = vmatprep.subr.mxu0 0.0
        %455 = vmatpush1.msra.mxu0 0.0
        %456 = vmatprep.subr.mxu0 0.0
        %457 = vmatpush1.msra.mxu0 0.0
        %458 = vmatprep.subr.mxu0 0.0
        %459 = vmatpush1.msra.mxu0 0.0
        %460 = vmatprep.mubr.f32.mxu0 0.0
        %461 = vmatmul.mubr.f32.gmra.mrb[0].mxu0 %v390
        %v462 = vpop.f32.mrb[0].mxu0
        %v463 = vadd.f32 %v386, %v462
        %v464 = vpop.f32.mrb[0].mxu0
        %465 = vdwg.mxu0
        %v466 = vmax.f32 %v463, 0.0
        %v467 = vld [vmem:[#allocation4] sm:$0x1]
        %vm468 = vcmask 278528
        %469 = vst.msk [vmem:[#allocation5] sm:$0x1] %vm468, %v467
        %v470 = vld [vmem:[#allocation4] sm:$0x1]
        %v472 = vlaneseq
        %v473 = vshrl.u32 %v472, 7
        %v474 = vsub.s32 0, %v473
        %v475 = vrot.slane %v470, %v474
        %476 = vrot.lane.b32.xlu0 %v475, 127
        %v477 = vpop.permute.xlu0 %476
        %479 = vst.msk [vmem:[#allocation5 + $0x1] sm:$0x1] %vm468, %v477
        %v480 = vld [vmem:[#allocation4] sm:$0x1]
        %v482 = vlaneseq
        %v483 = vshrl.u32 %v482, 7
        %v484 = vsub.s32 0, %v483
        %v485 = vrot.slane %v480, %v484
        %486 = vrot.lane.b32.xlu0 %v485, 126
        %v487 = vpop.permute.xlu0 %486
        %489 = vst.msk [vmem:[#allocation5 + $0x2] sm:$0x1] %vm468, %v487
        %v490 = vld [vmem:[#allocation4] sm:$0x1]
        %v492 = vlaneseq
        %v493 = vshrl.u32 %v492, 7
        %v494 = vsub.s32 0, %v493
        %v495 = vrot.slane %v490, %v494
        %496 = vrot.lane.b32.xlu0 %v495, 125
        %v497 = vpop.permute.xlu0 %496
        %499 = vst.msk [vmem:[#allocation5 + $0x3] sm:$0x1] %vm468, %v497
        %v500 = vld [vmem:[#allocation4] sm:$0x1]
        %v502 = vlaneseq
        %v503 = vshrl.u32 %v502, 7
        %v504 = vsub.s32 0, %v503
        %v505 = vrot.slane %v500, %v504
        %506 = vrot.lane.b32.xlu0 %v505, 124
        %v507 = vpop.permute.xlu0 %506
        %509 = vst.msk [vmem:[#allocation5 + $0x4] sm:$0x1] %vm468, %v507
        %v510 = vld [vmem:[#allocation4] sm:$0x1]
        %v512 = vlaneseq
        %v513 = vshrl.u32 %v512, 7
        %v514 = vsub.s32 0, %v513
        %v515 = vrot.slane %v510, %v514
        %516 = vrot.lane.b32.xlu0 %v515, 123
        %v517 = vpop.permute.xlu0 %516
        %519 = vst.msk [vmem:[#allocation5 + $0x5] sm:$0x1] %vm468, %v517
        %v520 = vld [vmem:[#allocation4] sm:$0x1]
        %v522 = vlaneseq
        %v523 = vshrl.u32 %v522, 7
        %v524 = vsub.s32 0, %v523
        %v525 = vrot.slane %v520, %v524
        %526 = vrot.lane.b32.xlu0 %v525, 122
        %v527 = vpop.permute.xlu0 %526
        %529 = vst.msk [vmem:[#allocation5 + $0x6] sm:$0x1] %vm468, %v527
        %v530 = vld [vmem:[#allocation4] sm:$0x1]
        %v532 = vlaneseq
        %v533 = vshrl.u32 %v532, 7
        %v534 = vsub.s32 0, %v533
        %v535 = vrot.slane %v530, %v534
        %536 = vrot.lane.b32.xlu0 %v535, 121
        %v537 = vpop.permute.xlu0 %536
        %539 = vst.msk [vmem:[#allocation5 + $0x7] sm:$0x1] %vm468, %v537
        %v540 = vld [vmem:[#allocation4] sm:$0x1]
        %v542 = vlaneseq
        %v543 = vshrl.u32 %v542, 7
        %v544 = vsub.s32 0, %v543
        %v545 = vrot.slane %v540, %v544
        %546 = vrot.lane.b32.xlu0 %v545, 120
        %v547 = vpop.permute.xlu0 %546
        %549 = vst.msk [vmem:[#allocation5 + $0x8] sm:$0x1] %vm468, %v547
        %v550 = vld [vmem:[#allocation4] sm:$0x1]
        %v552 = vlaneseq
        %v553 = vshrl.u32 %v552, 7
        %v554 = vsub.s32 0, %v553
        %v555 = vrot.slane %v550, %v554
        %556 = vrot.lane.b32.xlu0 %v555, 119
        %v557 = vpop.permute.xlu0 %556
        %559 = vst.msk [vmem:[#allocation5 + $0x9] sm:$0x1] %vm468, %v557
        %v560 = vld [vmem:[#allocation4] sm:$0x1]
        %v562 = vlaneseq
        %v563 = vshrl.u32 %v562, 7
        %v564 = vsub.s32 0, %v563
        %v565 = vrot.slane %v560, %v564
        %566 = vrot.lane.b32.xlu0 %v565, 118
        %v567 = vpop.permute.xlu0 %566
        %569 = vst.msk [vmem:[#allocation5 + $0xa] sm:$0x1] %vm468, %v567
        %v570 = vld [vmem:[#allocation4] sm:$0x1]
        %v572 = vlaneseq
        %v573 = vshrl.u32 %v572, 7
        %v574 = vsub.s32 0, %v573
        %v575 = vrot.slane %v570, %v574
        %576 = vrot.lane.b32.xlu0 %v575, 117
        %v577 = vpop.permute.xlu0 %576
        %579 = vst.msk [vmem:[#allocation5 + $0xb] sm:$0x1] %vm468, %v577
        %v580 = vld [vmem:[#allocation4] sm:$0x1]
        %v582 = vlaneseq
        %v583 = vshrl.u32 %v582, 7
        %v584 = vsub.s32 0, %v583
        %v585 = vrot.slane %v580, %v584
        %586 = vrot.lane.b32.xlu0 %v585, 116
        %v587 = vpop.permute.xlu0 %586
        %589 = vst.msk [vmem:[#allocation5 + $0xc] sm:$0x1] %vm468, %v587
        %v590 = vld [vmem:[#allocation4] sm:$0x1]
        %v592 = vlaneseq
        %v593 = vshrl.u32 %v592, 7
        %v594 = vsub.s32 0, %v593
        %v595 = vrot.slane %v590, %v594
        %596 = vrot.lane.b32.xlu0 %v595, 115
        %v597 = vpop.permute.xlu0 %596
        %599 = vst.msk [vmem:[#allocation5 + $0xd] sm:$0x1] %vm468, %v597
        %v600 = vld [vmem:[#allocation4] sm:$0x1]
        %v602 = vlaneseq
        %v603 = vshrl.u32 %v602, 7
        %v604 = vsub.s32 0, %v603
        %v605 = vrot.slane %v600, %v604
        %606 = vrot.lane.b32.xlu0 %v605, 114
        %v607 = vpop.permute.xlu0 %606
        %609 = vst.msk [vmem:[#allocation5 + $0xe] sm:$0x1] %vm468, %v607
        %v610 = vld [vmem:[#allocation4] sm:$0x1]
        %v612 = vlaneseq
        %v613 = vshrl.u32 %v612, 7
        %v614 = vsub.s32 0, %v613
        %v615 = vrot.slane %v610, %v614
        %616 = vrot.lane.b32.xlu0 %v615, 113
        %v617 = vpop.permute.xlu0 %616
        %619 = vst.msk [vmem:[#allocation5 + $0xf] sm:$0x1] %vm468, %v617
        %v620 = vld [vmem:[#allocation4] sm:$0x1]
        %v622 = vlaneseq
        %v623 = vshrl.u32 %v622, 7
        %v624 = vsub.s32 0, %v623
        %v625 = vrot.slane %v620, %v624
        %626 = vrot.lane.b32.xlu0 %v625, 112
        %v627 = vpop.permute.xlu0 %626
        %629 = vst.msk [vmem:[#allocation5 + $0x10] sm:$0x1] %vm468, %v627
        %v630 = vld [vmem:[#allocation4] sm:$0x1]
        %v632 = vlaneseq
        %v633 = vshrl.u32 %v632, 7
        %v634 = vsub.s32 0, %v633
        %v635 = vrot.slane %v630, %v634
        %636 = vrot.lane.b32.xlu0 %v635, 111
        %v637 = vpop.permute.xlu0 %636
        %639 = vst.msk [vmem:[#allocation5 + $0x11] sm:$0x1] %vm468, %v637
        %v640 = vld [vmem:[#allocation4] sm:$0x1]
        %v642 = vlaneseq
        %v643 = vshrl.u32 %v642, 7
        %v644 = vsub.s32 0, %v643
        %v645 = vrot.slane %v640, %v644
        %646 = vrot.lane.b32.xlu0 %v645, 110
        %v647 = vpop.permute.xlu0 %646
        %649 = vst.msk [vmem:[#allocation5 + $0x12] sm:$0x1] %vm468, %v647
        %v650 = vld [vmem:[#allocation4] sm:$0x1]
        %v652 = vlaneseq
        %v653 = vshrl.u32 %v652, 7
        %v654 = vsub.s32 0, %v653
        %v655 = vrot.slane %v650, %v654
        %656 = vrot.lane.b32.xlu0 %v655, 109
        %v657 = vpop.permute.xlu0 %656
        %659 = vst.msk [vmem:[#allocation5 + $0x13] sm:$0x1] %vm468, %v657
        %v660 = vld [vmem:[#allocation4] sm:$0x1]
        %v662 = vlaneseq
        %v663 = vshrl.u32 %v662, 7
        %v664 = vsub.s32 0, %v663
        %v665 = vrot.slane %v660, %v664
        %666 = vrot.lane.b32.xlu0 %v665, 108
        %v667 = vpop.permute.xlu0 %666
        %669 = vst.msk [vmem:[#allocation5 + $0x14] sm:$0x1] %vm468, %v667
        %v670 = vld [vmem:[#allocation4] sm:$0x1]
        %v672 = vlaneseq
        %v673 = vshrl.u32 %v672, 7
        %v674 = vsub.s32 0, %v673
        %v675 = vrot.slane %v670, %v674
        %676 = vrot.lane.b32.xlu0 %v675, 107
        %v677 = vpop.permute.xlu0 %676
        %679 = vst.msk [vmem:[#allocation5 + $0x15] sm:$0x1] %vm468, %v677
        %v680 = vld [vmem:[#allocation4] sm:$0x1]
        %v682 = vlaneseq
        %v683 = vshrl.u32 %v682, 7
        %v684 = vsub.s32 0, %v683
        %v685 = vrot.slane %v680, %v684
        %686 = vrot.lane.b32.xlu0 %v685, 106
        %v687 = vpop.permute.xlu0 %686
        %689 = vst.msk [vmem:[#allocation5 + $0x16] sm:$0x1] %vm468, %v687
        %v690 = vld [vmem:[#allocation4] sm:$0x1]
        %v692 = vlaneseq
        %v693 = vshrl.u32 %v692, 7
        %v694 = vsub.s32 0, %v693
        %v695 = vrot.slane %v690, %v694
        %696 = vrot.lane.b32.xlu0 %v695, 105
        %v697 = vpop.permute.xlu0 %696
        %699 = vst.msk [vmem:[#allocation5 + $0x17] sm:$0x1] %vm468, %v697
        %v700 = vld [vmem:[#allocation4] sm:$0x1]
        %v702 = vlaneseq
        %v703 = vshrl.u32 %v702, 7
        %v704 = vsub.s32 0, %v703
        %v705 = vrot.slane %v700, %v704
        %706 = vrot.lane.b32.xlu0 %v705, 104
        %v707 = vpop.permute.xlu0 %706
        %709 = vst.msk [vmem:[#allocation5 + $0x18] sm:$0x1] %vm468, %v707
        %v710 = vld [vmem:[#allocation4] sm:$0x1]
        %v712 = vlaneseq
        %v713 = vshrl.u32 %v712, 7
        %v714 = vsub.s32 0, %v713
        %v715 = vrot.slane %v710, %v714
        %716 = vrot.lane.b32.xlu0 %v715, 103
        %v717 = vpop.permute.xlu0 %716
        %719 = vst.msk [vmem:[#allocation5 + $0x19] sm:$0x1] %vm468, %v717
        %v720 = vld [vmem:[#allocation4] sm:$0x1]
        %v722 = vlaneseq
        %v723 = vshrl.u32 %v722, 7
        %v724 = vsub.s32 0, %v723
        %v725 = vrot.slane %v720, %v724
        %726 = vrot.lane.b32.xlu0 %v725, 102
        %v727 = vpop.permute.xlu0 %726
        %729 = vst.msk [vmem:[#allocation5 + $0x1a] sm:$0x1] %vm468, %v727
        %v730 = vld [vmem:[#allocation4] sm:$0x1]
        %v732 = vlaneseq
        %v733 = vshrl.u32 %v732, 7
        %v734 = vsub.s32 0, %v733
        %v735 = vrot.slane %v730, %v734
        %736 = vrot.lane.b32.xlu0 %v735, 101
        %v737 = vpop.permute.xlu0 %736
        %739 = vst.msk [vmem:[#allocation5 + $0x1b] sm:$0x1] %vm468, %v737
        %v740 = vld [vmem:[#allocation4] sm:$0x1]
        %v742 = vlaneseq
        %v743 = vshrl.u32 %v742, 7
        %v744 = vsub.s32 0, %v743
        %v745 = vrot.slane %v740, %v744
        %746 = vrot.lane.b32.xlu0 %v745, 100
        %v747 = vpop.permute.xlu0 %746
        %749 = vst.msk [vmem:[#allocation5 + $0x1c] sm:$0x1] %vm468, %v747
        %v750 = vld [vmem:[#allocation4] sm:$0x1]
        %v752 = vlaneseq
        %v753 = vshrl.u32 %v752, 7
        %v754 = vsub.s32 0, %v753
        %v755 = vrot.slane %v750, %v754
        %756 = vrot.lane.b32.xlu0 %v755, 99
        %v757 = vpop.permute.xlu0 %756
        %759 = vst.msk [vmem:[#allocation5 + $0x1d] sm:$0x1] %vm468, %v757
        %v760 = vld [vmem:[%s3] sm:$0x1]
        %v761 = vld [vmem:[#allocation5] sm:$0xff]
        %v762 = vld [vmem:[#allocation5 + $0x8] sm:$0xff]
        %v763 = vld [vmem:[#allocation5 + $0x10] sm:$0xff]
        %v764 = vld [vmem:[#allocation5 + $0x18] sm:$0x3f]
        %766 = vset.pattern.permute.xlu0 30
        %767 = vperm.xlu0 %766, %v760
        %v768 = vpop.permute.xlu0 %767
        %v770 = vlaneseq
        %v771 = vshrl.u32 %v770, 7
        %v772 = vsub.s32 0, %v771
        %v773 = vrot.slane %v768, %v772
        %vm774 = vcmask 244736
        %v775 = vsel %vm774, %v760, 0
        %vm777 = vcmask 1045504
        %v779 = vsel %vm777, %v764, 0
        %781 = vmatprep.subr.mxu0 0.0
        %782 = vmatpush1.msra.mxu0 %v761
        %783 = vmatprep.subr.mxu0 0.0
        %784 = vmatpush1.msra.mxu0 %v762
        %785 = vmatprep.subr.mxu0 0.0
        %786 = vmatpush1.msra.mxu0 %v763
        %787 = vmatprep.subr.mxu0 0.0
        %788 = vmatpush1.msra.mxu0 %v779
        %789 = vmatprep.subr.mxu0 0.0
        %790 = vmatpush1.msra.mxu0 0.0
        %791 = vmatprep.subr.mxu0 0.0
        %792 = vmatpush1.msra.mxu0 0.0
        %793 = vmatprep.subr.mxu0 0.0
        %794 = vmatpush1.msra.mxu0 0.0
        %795 = vmatprep.subr.mxu0 0.0
        %796 = vmatpush1.msra.mxu0 0.0
        %797 = vmatprep.subr.mxu0 0.0
        %798 = vmatpush1.msra.mxu0 0.0
        %799 = vmatprep.subr.mxu0 0.0
        %800 = vmatpush1.msra.mxu0 0.0
        %801 = vmatprep.subr.mxu0 0.0
        %802 = vmatpush1.msra.mxu0 0.0
        %803 = vmatprep.subr.mxu0 0.0
        %804 = vmatpush1.msra.mxu0 0.0
        %805 = vmatprep.subr.mxu0 0.0
        %806 = vmatpush1.msra.mxu0 0.0
        %807 = vmatprep.subr.mxu0 0.0
        %808 = vmatpush1.msra.mxu0 0.0
        %809 = vmatprep.subr.mxu0 0.0
        %810 = vmatpush1.msra.mxu0 0.0
        %811 = vmatprep.subr.mxu0 0.0
        %812 = vmatpush1.msra.mxu0 0.0
        %813 = vmatprep.subr.mxu0 0.0
        %814 = vmatpush1.msra.mxu0 0.0
        %815 = vmatprep.subr.mxu0 0.0
        %816 = vmatpush1.msra.mxu0 0.0
        %817 = vmatprep.subr.mxu0 0.0
        %818 = vmatpush1.msra.mxu0 0.0
        %819 = vmatprep.subr.mxu0 0.0
        %820 = vmatpush1.msra.mxu0 0.0
        %821 = vmatprep.subr.mxu0 0.0
        %822 = vmatpush1.msra.mxu0 0.0
        %823 = vmatprep.subr.mxu0 0.0
        %824 = vmatpush1.msra.mxu0 0.0
        %825 = vmatprep.subr.mxu0 0.0
        %826 = vmatpush1.msra.mxu0 0.0
        %827 = vmatprep.subr.mxu0 0.0
        %828 = vmatpush1.msra.mxu0 0.0
        %829 = vmatprep.subr.mxu0 0.0
        %830 = vmatpush1.msra.mxu0 0.0
        %831 = vmatprep.subr.mxu0 0.0
        %832 = vmatpush1.msra.mxu0 0.0
        %833 = vmatprep.subr.mxu0 0.0
        %834 = vmatpush1.msra.mxu0 0.0
        %835 = vmatprep.subr.mxu0 0.0
        %836 = vmatpush1.msra.mxu0 0.0
        %837 = vmatprep.subr.mxu0 0.0
        %838 = vmatpush1.msra.mxu0 0.0
        %839 = vmatprep.subr.mxu0 0.0
        %840 = vmatpush1.msra.mxu0 0.0
        %841 = vmatprep.subr.mxu0 0.0
        %842 = vmatpush1.msra.mxu0 0.0
        %843 = vmatprep.subr.mxu0 0.0
        %844 = vmatpush1.msra.mxu0 0.0
        %845 = vmatprep.mubr.f32.mxu0 0.0
        %846 = vmatmul.mubr.f32.gmra.mrb[0].mxu0 %v775
        %v847 = vpop.f32.mrb[0].mxu0
        %v848 = vadd.f32 %v773, %v847
        %v849 = vpop.f32.mrb[0].mxu0
        %850 = vdwg.mxu0
        %v851 = vmax.f32 %v848, 0.0
        %852 = vst.msk [vmem:[#allocation6] sm:$0x1] %vm468, %v851
        %p853 = scmp.eq.s32.totalorder %s26, 0
        // Predicated region
        $region49: #{tpu_custom_call.1} parent=47 // pred_check
          %p854 = pneg %p853
        $region50: #{tpu_custom_call.1} parent=47 // pred_check_branch
          %856 = sbr.rel (%p854) target = $region52
        $region51: #{tpu_custom_call.1} parent=47 // pred_region
          %vm857 = vcmask 147456
          %858 = vst.msk [vmem:[#allocation6] sm:$0x1] %vm857, 0.0
        $region52: #{tpu_custom_call.1} parent=47 // pred_fallthru
          _
        %v859 = vld [vmem:[#allocation6] sm:$0x1]
        %vm860 = vcmask 122880
        %861 = vst.msk [vmem:[#allocation7] sm:$0x1] %vm860, %v859
        %v862 = vld [vmem:[#allocation6] sm:$0x1]
        %v864 = vlaneseq
        %v865 = vshrl.u32 %v864, 7
        %v866 = vsub.s32 0, %v865
        %v867 = vrot.slane %v862, %v866
        %868 = vrot.lane.b32.xlu0 %v867, 127
        %v869 = vpop.permute.xlu0 %868
        %871 = vst.msk [vmem:[#allocation7 + $0x1] sm:$0x1] %vm860, %v869
        %v872 = vld [vmem:[#allocation6] sm:$0x1]
        %v874 = vlaneseq
        %v875 = vshrl.u32 %v874, 7
        %v876 = vsub.s32 0, %v875
        %v877 = vrot.slane %v872, %v876
        %878 = vrot.lane.b32.xlu0 %v877, 126
        %v879 = vpop.permute.xlu0 %878
        %881 = vst.msk [vmem:[#allocation7 + $0x2] sm:$0x1] %vm860, %v879
        %v882 = vld [vmem:[#allocation6] sm:$0x1]
        %v884 = vlaneseq
        %v885 = vshrl.u32 %v884, 7
        %v886 = vsub.s32 0, %v885
        %v887 = vrot.slane %v882, %v886
        %888 = vrot.lane.b32.xlu0 %v887, 125
        %v889 = vpop.permute.xlu0 %888
        %891 = vst.msk [vmem:[#allocation7 + $0x3] sm:$0x1] %vm860, %v889
        %v892 = vld [vmem:[#allocation6] sm:$0x1]
        %v894 = vlaneseq
        %v895 = vshrl.u32 %v894, 7
        %v896 = vsub.s32 0, %v895
        %v897 = vrot.slane %v892, %v896
        %898 = vrot.lane.b32.xlu0 %v897, 124
        %v899 = vpop.permute.xlu0 %898
        %901 = vst.msk [vmem:[#allocation7 + $0x4] sm:$0x1] %vm860, %v899
        %v902 = vld [vmem:[#allocation6] sm:$0x1]
        %v904 = vlaneseq
        %v905 = vshrl.u32 %v904, 7
        %v906 = vsub.s32 0, %v905
        %v907 = vrot.slane %v902, %v906
        %908 = vrot.lane.b32.xlu0 %v907, 123
        %v909 = vpop.permute.xlu0 %908
        %911 = vst.msk [vmem:[#allocation7 + $0x5] sm:$0x1] %vm860, %v909
        %v912 = vld [vmem:[#allocation6] sm:$0x1]
        %v914 = vlaneseq
        %v915 = vshrl.u32 %v914, 7
        %v916 = vsub.s32 0, %v915
        %v917 = vrot.slane %v912, %v916
        %918 = vrot.lane.b32.xlu0 %v917, 122
        %v919 = vpop.permute.xlu0 %918
        %921 = vst.msk [vmem:[#allocation7 + $0x6] sm:$0x1] %vm860, %v919
        %v922 = vld [vmem:[#allocation6] sm:$0x1]
        %v924 = vlaneseq
        %v925 = vshrl.u32 %v924, 7
        %v926 = vsub.s32 0, %v925
        %v927 = vrot.slane %v922, %v926
        %928 = vrot.lane.b32.xlu0 %v927, 121
        %v929 = vpop.permute.xlu0 %928
        %931 = vst.msk [vmem:[#allocation7 + $0x7] sm:$0x1] %vm860, %v929
        %v932 = vld [vmem:[#allocation6] sm:$0x1]
        %v934 = vlaneseq
        %v935 = vshrl.u32 %v934, 7
        %v936 = vsub.s32 0, %v935
        %v937 = vrot.slane %v932, %v936
        %938 = vrot.lane.b32.xlu0 %v937, 120
        %v939 = vpop.permute.xlu0 %938
        %941 = vst.msk [vmem:[#allocation7 + $0x8] sm:$0x1] %vm860, %v939
        %v942 = vld [vmem:[#allocation6] sm:$0x1]
        %v944 = vlaneseq
        %v945 = vshrl.u32 %v944, 7
        %v946 = vsub.s32 0, %v945
        %v947 = vrot.slane %v942, %v946
        %948 = vrot.lane.b32.xlu0 %v947, 119
        %v949 = vpop.permute.xlu0 %948
        %951 = vst.msk [vmem:[#allocation7 + $0x9] sm:$0x1] %vm860, %v949
        %v952 = vld [vmem:[#allocation6] sm:$0x1]
        %v954 = vlaneseq
        %v955 = vshrl.u32 %v954, 7
        %v956 = vsub.s32 0, %v955
        %v957 = vrot.slane %v952, %v956
        %958 = vrot.lane.b32.xlu0 %v957, 118
        %v959 = vpop.permute.xlu0 %958
        %961 = vst.msk [vmem:[#allocation7 + $0xa] sm:$0x1] %vm860, %v959
        %v962 = vld [vmem:[#allocation6] sm:$0x1]
        %v964 = vlaneseq
        %v965 = vshrl.u32 %v964, 7
        %v966 = vsub.s32 0, %v965
        %v967 = vrot.slane %v962, %v966
        %968 = vrot.lane.b32.xlu0 %v967, 117
        %v969 = vpop.permute.xlu0 %968
        %971 = vst.msk [vmem:[#allocation7 + $0xb] sm:$0x1] %vm860, %v969
        %v972 = vld [vmem:[#allocation6] sm:$0x1]
        %v974 = vlaneseq
        %v975 = vshrl.u32 %v974, 7
        %v976 = vsub.s32 0, %v975
        %v977 = vrot.slane %v972, %v976
        %978 = vrot.lane.b32.xlu0 %v977, 116
        %v979 = vpop.permute.xlu0 %978
        %981 = vst.msk [vmem:[#allocation7 + $0xc] sm:$0x1] %vm860, %v979
        %v982 = vld [vmem:[#allocation6] sm:$0x1]
        %v984 = vlaneseq
        %v985 = vshrl.u32 %v984, 7
        %v986 = vsub.s32 0, %v985
        %v987 = vrot.slane %v982, %v986
        %988 = vrot.lane.b32.xlu0 %v987, 115
        %v989 = vpop.permute.xlu0 %988
        %991 = vst.msk [vmem:[#allocation7 + $0xd] sm:$0x1] %vm860, %v989
        %v992 = vld [vmem:[#allocation6] sm:$0x1]
        %v994 = vlaneseq
        %v995 = vshrl.u32 %v994, 7
        %v996 = vsub.s32 0, %v995
        %v997 = vrot.slane %v992, %v996
        %998 = vrot.lane.b32.xlu0 %v997, 114
        %v999 = vpop.permute.xlu0 %998
        %1001 = vst.msk [vmem:[#allocation7 + $0xe] sm:$0x1] %vm860, %v999
        %v1002 = vld [vmem:[#allocation6] sm:$0x1]
        %v1004 = vlaneseq
        %v1005 = vshrl.u32 %v1004, 7
        %v1006 = vsub.s32 0, %v1005
        %v1007 = vrot.slane %v1002, %v1006
        %1008 = vrot.lane.b32.xlu0 %v1007, 113
        %v1009 = vpop.permute.xlu0 %1008
        %1011 = vst.msk [vmem:[#allocation7 + $0xf] sm:$0x1] %vm860, %v1009
        %v1012 = vld [vmem:[#allocation6] sm:$0x1]
        %v1014 = vlaneseq
        %v1015 = vshrl.u32 %v1014, 7
        %v1016 = vsub.s32 0, %v1015
        %v1017 = vrot.slane %v1012, %v1016
        %1018 = vrot.lane.b32.xlu0 %v1017, 112
        %v1019 = vpop.permute.xlu0 %1018
        %1021 = vst.msk [vmem:[#allocation7 + $0x10] sm:$0x1] %vm860, %v1019
        %v1022 = vld [vmem:[#allocation6] sm:$0x1]
        %v1024 = vlaneseq
        %v1025 = vshrl.u32 %v1024, 7
        %v1026 = vsub.s32 0, %v1025
        %v1027 = vrot.slane %v1022, %v1026
        %1028 = vrot.lane.b32.xlu0 %v1027, 111
        %v1029 = vpop.permute.xlu0 %1028
        %1031 = vst.msk [vmem:[#allocation7 + $0x11] sm:$0x1] %vm860, %v1029
        %v1032 = vld [vmem:[#allocation6] sm:$0x1]
        %v1034 = vlaneseq
        %v1035 = vshrl.u32 %v1034, 7
        %v1036 = vsub.s32 0, %v1035
        %v1037 = vrot.slane %v1032, %v1036
        %1038 = vrot.lane.b32.xlu0 %v1037, 110
        %v1039 = vpop.permute.xlu0 %1038
        %1041 = vst.msk [vmem:[#allocation7 + $0x12] sm:$0x1] %vm860, %v1039
        %v1042 = vld [vmem:[#allocation6] sm:$0x1]
        %v1044 = vlaneseq
        %v1045 = vshrl.u32 %v1044, 7
        %v1046 = vsub.s32 0, %v1045
        %v1047 = vrot.slane %v1042, %v1046
        %1048 = vrot.lane.b32.xlu0 %v1047, 109
        %v1049 = vpop.permute.xlu0 %1048
        %1051 = vst.msk [vmem:[#allocation7 + $0x13] sm:$0x1] %vm860, %v1049
        %v1052 = vld [vmem:[%s4] sm:$0x1]
        %v1053 = vld [vmem:[#allocation7] sm:$0xff]
        %v1054 = vld [vmem:[#allocation7 + $0x8] sm:$0xff]
        %v1055 = vld [vmem:[#allocation7 + $0x10] sm:$0xf]
        %vm1056 = vcmask 162816
        %v1058 = vsel %vm1056, %v1052, 0
        %v1061 = vsel %vm392, %v1055, 0
        %1063 = vmatprep.subr.mxu0 0.0
        %1064 = vmatpush1.msra.mxu0 %v1053
        %1065 = vmatprep.subr.mxu0 0.0
        %1066 = vmatpush1.msra.mxu0 %v1054
        %1067 = vmatprep.subr.mxu0 0.0
        %1068 = vmatpush1.msra.mxu0 %v1061
        %1069 = vmatprep.subr.mxu0 0.0
        %1070 = vmatpush1.msra.mxu0 0.0
        %1071 = vmatprep.subr.mxu0 0.0
        %1072 = vmatpush1.msra.mxu0 0.0
        %1073 = vmatprep.subr.mxu0 0.0
        %1074 = vmatpush1.msra.mxu0 0.0
        %1075 = vmatprep.subr.mxu0 0.0
        %1076 = vmatpush1.msra.mxu0 0.0
        %1077 = vmatprep.subr.mxu0 0.0
        %1078 = vmatpush1.msra.mxu0 0.0
        %1079 = vmatprep.subr.mxu0 0.0
        %1080 = vmatpush1.msra.mxu0 0.0
        %1081 = vmatprep.subr.mxu0 0.0
        %1082 = vmatpush1.msra.mxu0 0.0
        %1083 = vmatprep.subr.mxu0 0.0
        %1084 = vmatpush1.msra.mxu0 0.0
        %1085 = vmatprep.subr.mxu0 0.0
        %1086 = vmatpush1.msra.mxu0 0.0
        %1087 = vmatprep.subr.mxu0 0.0
        %1088 = vmatpush1.msra.mxu0 0.0
        %1089 = vmatprep.subr.mxu0 0.0
        %1090 = vmatpush1.msra.mxu0 0.0
        %1091 = vmatprep.subr.mxu0 0.0
        %1092 = vmatpush1.msra.mxu0 0.0
        %1093 = vmatprep.subr.mxu0 0.0
        %1094 = vmatpush1.msra.mxu0 0.0
        %1095 = vmatprep.subr.mxu0 0.0
        %1096 = vmatpush1.msra.mxu0 0.0
        %1097 = vmatprep.subr.mxu0 0.0
        %1098 = vmatpush1.msra.mxu0 0.0
        %1099 = vmatprep.subr.mxu0 0.0
        %1100 = vmatpush1.msra.mxu0 0.0
        %1101 = vmatprep.subr.mxu0 0.0
        %1102 = vmatpush1.msra.mxu0 0.0
        %1103 = vmatprep.subr.mxu0 0.0
        %1104 = vmatpush1.msra.mxu0 0.0
        %1105 = vmatprep.subr.mxu0 0.0
        %1106 = vmatpush1.msra.mxu0 0.0
        %1107 = vmatprep.subr.mxu0 0.0
        %1108 = vmatpush1.msra.mxu0 0.0
        %1109 = vmatprep.subr.mxu0 0.0
        %1110 = vmatpush1.msra.mxu0 0.0
        %1111 = vmatprep.subr.mxu0 0.0
        %1112 = vmatpush1.msra.mxu0 0.0
        %1113 = vmatprep.subr.mxu0 0.0
        %1114 = vmatpush1.msra.mxu0 0.0
        %1115 = vmatprep.subr.mxu0 0.0
        %1116 = vmatpush1.msra.mxu0 0.0
        %1117 = vmatprep.subr.mxu0 0.0
        %1118 = vmatpush1.msra.mxu0 0.0
        %1119 = vmatprep.subr.mxu0 0.0
        %1120 = vmatpush1.msra.mxu0 0.0
        %1121 = vmatprep.subr.mxu0 0.0
        %1122 = vmatpush1.msra.mxu0 0.0
        %1123 = vmatprep.subr.mxu0 0.0
        %1124 = vmatpush1.msra.mxu0 0.0
        %1125 = vmatprep.subr.mxu0 0.0
        %1126 = vmatpush1.msra.mxu0 0.0
        %1127 = vmatprep.mubr.f32.mxu0 0.0
        %1128 = vmatmul.mubr.f32.gmra.mrb[0].mxu0 %v1058
        %v1129 = vpop.f32.mrb[0].mxu0
        %v1130 = vadd.f32 0.0, %v1129
        %v1131 = vpop.f32.mrb[0].mxu0
        %1132 = vdwg.mxu0
        %v1133 = vld [vmem:[%s327] sm:$0xff]
        %v1134 = vld [vmem:[#allocation6] sm:$0x1]
        %1136 = vset.pattern.permute.xlu0 0
        %1137 = vperm.xlu0 %1136, %v1133
        %v1138 = vpop.permute.xlu0 %1137
        %v1141 = vlaneseq
        %v1142 = vshrl.u32 %v1141, 7
        %v1143 = vsub.s32 0, %v1142
        %v1144 = vrot.slane %v1134, %v1143
        %v1146 = vmul.f32 %v1138, %v1144
        %v1147 = vlaneseq
        %v1148 = vshrl.u32 %v1147, 7
        %v1149 = vsub.s32 0, %v1148
        %v1150 = vrot.slane %v1130, %v1149
        %v1151 = vmul.f32 %v1138, %v1150
        %v1152 = vlaneseq
        %v1153 = vshrl.u32 %v1152, 7
        %v1154 = vsub.s32 0, %v1153
        %v1155 = vrot.slane %v1052, %v1154
        %1156 = vset.pattern.permute.xlu0 20
        %1157 = vperm.xlu0 %1156, %v1155
        %v1158 = vpop.permute.xlu0 %1157
        %v1160 = vadd.f32 %v1151, %v1158
        %v1161 = vmax.f32 %v1160, 0.0
        %v1162 = vsub.f32 %v466, %v1161
        %v1163 = vmax.f32 %v1162, 0.0
        %1165 = vrot.lane.b32.xlu0 %v1163, 19
        %v1166 = vpop.permute.xlu0 %1165
        %v1168 = vadd.f32 %v1146, %v1166
        %1170 = vrot.lane.b32.xlu0 %v1168, 109
        %v1171 = vpop.permute.xlu0 %1170
        %vm1173 = vcmask 130048
        %1174 = vst.msk [vmem:[%s323] sm:$0xff] %vm1173, %v1171
        %s1175 = sand.u32 %s209, 1
        %s1176 = scalar_lea.sflag [#allocation9], %s1175
        %s1177 = sand.u32 %s209, 1
        %s1178 = smul.addr %s1177, 8
        %s1179 = scalar_lea.vmem [#allocation8], %s1178
        // Predicated region
        $region53: #{tpu_custom_call.1} parent=47 // pred_check
          %p1180 = pneg %p219
        $region54: #{tpu_custom_call.1} parent=47 // pred_check_branch
          %1182 = sbr.rel (%p1180) target = $region56
        $region55: #{tpu_custom_call.1} parent=47 // pred_region
          %s1184 = ssub.s32 128, 128
          %1185 = vsyncadd %s1176, %s1184
          %s1186 = sadd.s32 %s26, %s25
          %s1187 = smul.addr %s1186, 128
          %s1188 = scalar_lea.hbm %s7, %s1187
          %s1190 = sshll.u32 %s1179, 4
          %s1191 = int_to_ptr.vmem [resolvable:$true] %s1190
          %1193 = dma.vmem_to_hbm [thread:$0]  %s1191, 128, %s1188, %s1176
        $region56: #{tpu_custom_call.1} parent=47 // pred_fallthru
          _
      $region48: #{tpu_custom_call.1} parent=5 // pred_fallthru
        _
      %p1194 = scmp.le.s32.totalorder 2, %s16
      // Predicated region
      $region57: #{tpu_custom_call.1} parent=5 // pred_check
        %p1195 = pneg %p1194
      $region58: #{tpu_custom_call.1} parent=5 // pred_check_branch
        %1197 = sbr.rel (%p1195) target = $region60
      $region59: #{tpu_custom_call.1} parent=5 // pred_region
        %s1198 = ssub.s32 %s16, 2
        // Predicated region
        $region61: #{tpu_custom_call.1} parent=59 // pred_check
          %p1199 = pneg %p225
        $region62: #{tpu_custom_call.1} parent=59 // pred_check_branch
          %1201 = sbr.rel (%p1199) target = $region64
        $region63: #{tpu_custom_call.1} parent=59 // pred_region
          %s1202 = sand.u32 %s210, 1
          %s1203 = scalar_lea.sflag [#allocation9], %s1202
          %s1204 = sand.u32 %s210, 1
          %s1205 = smul.addr %s1204, 8
          %s1206 = scalar_lea.vmem [#allocation8], %s1205
          %1207 = dma.done %s1203, 128
        $region64: #{tpu_custom_call.1} parent=59 // pred_fallthru
          _
      $region60: #{tpu_custom_call.1} parent=5 // pred_fallthru
        _
    $region6: #{tpu_custom_call.1} parent=1 // loop_footer
      %s20 = sadd.s32 1, %s16
    $region7: #{tpu_custom_call.1} parent=1 // loop_footer_branch
      %15 = sbr.rel target = $region3
    $region8: #{tpu_custom_call.1} parent=1 // loop_exit
      _
    %1208 = vsyncpa [#allocation9], 1
    %s1209 = scalar_lea.sflag [#allocation9], 1
    %1210 = vsyncpa %s1209, 1

</llo_original>
